<compile_context>
chip_gen: v5e
topology: v5e:2x2
jax: 0.10.0
libtpu: 0.0.40
codegen_flags: <defaults>
</compile_context>

<pallas_src>
import functools

import jax
import jax.numpy as jnp
from jax import lax
from jax.experimental import pallas as pl
from jax.experimental.pallas import tpu as pltpu


def _conv_dt_kernel(x_ref, o_ref, *, taps, H, W):
    # x_ref, o_ref: (F, H, W) f32 blocks in VMEM (channel dim squeezed away).
    # taps: static tuple of (dh, dw, weight); zero taps removed, 1/resol folded in.
    x = x_ref[...]                                        # (F, H, W)

    # Border coordinates built once per block, shared by every tap and
    # amortized over all F frames (hoisted out of the tap loop).
    row = lax.broadcasted_iota(jnp.int32, (H, W), 0)
    col = lax.broadcasted_iota(jnp.int32, (H, W), 1)

    acc = None
    for dh, dw, w in taps:                                # static unroll, nonzero taps only
        if dh == 0 and dw == 0:
            term = jnp.float32(w) * x
        else:
            s = x
            if dh != 0:
                s = pltpu.roll(s, shift=(-dh) % H, axis=1)   # sublane rotation (XLU)
            if dw != 0:
                s = pltpu.roll(s, shift=(-dw) % W, axis=2)   # lane rotation (XLU)
            # Zero-padding emulation via a pre-masked per-tap weight plane:
            # w where the shifted source index stays inside [0,H) x [0,W), else 0.
            mask = None
            if dh > 0:
                mask = row < (H - dh)
            elif dh < 0:
                mask = row >= (-dh)
            if dw > 0:
                m2 = col < (W - dw)
                mask = m2 if mask is None else (mask & m2)
            elif dw < 0:
                m2 = col >= (-dw)
                mask = m2 if mask is None else (mask & m2)
            plane = jnp.where(mask, jnp.float32(w), jnp.float32(0.0))   # (H, W)
            term = s * plane                                            # broadcasts over F
        acc = term if acc is None else acc + term

    if acc is None:                                       # all-zero filter
        acc = jnp.zeros_like(x)
    o_ref[...] = acc.astype(o_ref.dtype)


def _num_tensorcores():
    """Best-effort TensorCore-per-chip count (v5e/v6e: 1, v7x/v4/v5p: 2)."""
    try:
        info = pltpu.get_tpu_info()
        for name in ("num_cores", "core_count", "cores_per_chip",
                     "num_tensorcores", "tensorcore_count"):
            v = getattr(info, name, None)
            if isinstance(v, int) and v > 0:
                return v
    except Exception:
        pass
    try:
        kind = jax.devices()[0].device_kind.lower()
    except Exception:
        kind = ""
    return 2 if any(s in kind for s in ("v4", "v5p", "7x", "v7")) else 1


def _pick_frames_per_block(n_frames, frame_bytes, num_cores):
    # Peak VMEM is ~7 block-sized arrays: 2x input (double buffer), 2x output
    # (double buffer) and ~3 whole-block temporaries inside the kernel.  Keep
    # that under ~20 MiB so it fits every generation's scoped-VMEM limit with
    # headroom (incl. v7x: 64 MiB physical / 32 MiB scoped).
    budget = 20 * 1024 * 1024
    f = max(1, budget // (7 * frame_bytes))
    f = min(f, n_frames)
    if num_cores >= 2:
        # Only on multi-TensorCore chips (v7x): keep >= num_cores grid steps so
        # the "parallel" axis can shard across cores, but never shrink blocks
        # below ~8 frames.  Single-TC v5e/v6e keep the largest block possible.
        per_core = pl.cdiv(n_frames, num_cores)
        if per_core >= 8:
            f = min(f, per_core)
    return max(1, f)


def conv2d_time_derivative(x, der_filter, resol, *, frames_per_block=None):
    """Pallas equivalent of Conv2dTimeDerivative.forward.

    x:          (T, 1, H, W) float32
    der_filter: (1, 1, K, K) float32 PyTorch OIHW conv weight
                (cross-correlation, zero padding = K // 2, fixed constants)
    resol:      Python scalar normalization (e.g. 2 * dt)
    returns:    (T - 2, 1, H, W) float32

    NOTE: der_filter and resol must be concrete (host) values at trace time —
    they are a fixed, non-trainable buffer / constant in PhyCRNet, so the
    filter taps are specialized into the kernel (zero taps dropped, 1/resol
    folded in).  Passing traced values here is not supported.
    """
    T, C, H, W = x.shape
    assert C == 1, "This implementation assumes single-channel input data."
    assert T >= 3, "Need at least three timesteps."
    K = der_filter.shape[-1]
    assert der_filter.shape[-2] == K and K % 2 == 1, "Filter must be odd-sized square."
    p = K // 2

    # Trace-time filter specialization.
    w2 = jax.device_get(der_filter).reshape(K, K).astype("float32") / float(resol)
    taps = tuple((i - p, j - p, float(w2[i, j]))
                 for i in range(K) for j in range(K) if float(w2[i, j]) != 0.0)

    n = T - 2
    if frames_per_block is None:
        F = _pick_frames_per_block(n, H * W * 4, _num_tensorcores())
    else:
        F = max(1, min(int(frames_per_block), n))

    # Middle-frame slice stays a plain slice; allow_input_fusion lets XLA fuse
    # it into the Pallas call so it is never materialized separately in HBM.
    x_mid = x[1:-1]                                       # (n, 1, H, W)

    kernel = functools.partial(_conv_dt_kernel, taps=taps, H=H, W=W)

    return pl.pallas_call(
        kernel,
        out_shape=jax.ShapeDtypeStruct((n, 1, H, W), jnp.float32),
        grid=(pl.cdiv(n, F),),                            # ragged last block allowed
        in_specs=[pl.BlockSpec((F, None, H, W), lambda t: (t, 0, 0, 0))],
        out_specs=pl.BlockSpec((F, None, H, W), lambda t: (t, 0, 0, 0)),
        compiler_params=pltpu.CompilerParams(
            dimension_semantics=("parallel",),
            allow_input_fusion=[True],
            vmem_limit_bytes=32 * 1024 * 1024),
    )(x_mid)


def _reference(x, der_filter, resol):
    K = der_filter.shape[-1]
    y = lax.conv_general_dilated(
        x[1:-1], der_filter, window_strides=(1, 1),
        padding=[(K // 2, K // 2), (K // 2, K // 2)],
        dimension_numbers=("NCHW", "OIHW", "NCHW"))
    return y / resol


if __name__ == "__main__":
    key = jax.random.PRNGKey(0)
    # Burgers' setup in PhyCRNet: single-channel 128x128 grid; a short clip of
    # T=12 frames keeps the test small (~768 KiB) while staying lane-dense.
    T, C, H, W = 12, 1, 128, 128
    x = jax.random.normal(key, (T, C, H, W), dtype=jnp.float32)

    # Deterministic DerFilter of shape (1, K, K), unsqueezed to the (1,1,K,K)
    # conv weight like the PyTorch module does.  Taps in both spatial
    # directions so both lane and sublane shifts are exercised.
    der_filter = jnp.array([[[0.0, -1.0, 0.0],
                             [-0.5, 0.0, 0.5],
                             [0.0, 1.0, 0.0]]], dtype=jnp.float32)[:, None]
    resol = 0.05  # e.g. 2 * dt

    ref = _reference(x, der_filter, resol)

    # Default (auto) tile selection.
    out = conv2d_time_derivative(x, der_filter, resol)
    out = jax.block_until_ready(out)
    assert out.shape == (T - 2, 1, H, W), out.shape
    assert jnp.allclose(out, ref, rtol=1e-5, atol=1e-4), \
        float(jnp.max(jnp.abs(out - ref)))

    # Also exercise the ragged (non-divisible) multi-step tiling path:
    # n = 10 frames in blocks of 3 -> grid of 4 with a partial last block.
    out_r = conv2d_time_derivative(x, der_filter, resol, frames_per_block=3)
    out_r = jax.block_until_ready(out_r)
    assert jnp.allclose(out_r, ref, rtol=1e-5, atol=1e-4), \
        float(jnp.max(jnp.abs(out_r - ref)))

    print("KERNEL_OK")
</pallas_src>

<mosaic_0001>
module attributes {stable_mosaic.version = 11 : i64} {
  func.func @_conv_dt_kernel(%arg0: i32, %arg1: memref<10x1x128x128xf32, #tpu.memory_space<vmem>>, %arg2: memref<10x1x128x128xf32, #tpu.memory_space<vmem>>) attributes {dimension_semantics = [#tpu.dimension_semantics<parallel>], iteration_bounds = array<i64: 1>, scalar_prefetch = 0 : i64, scratch_operands = 0 : i64, tpu.core_type = #tpu.core_type<tc>, window_params = [{transform_indices = @transform_0, window_bounds = array<i64: 10, 1, 128, 128>}, {transform_indices = @transform_1, window_bounds = array<i64: 10, 1, 128, 128>}]} {
    %c0 = arith.constant 0 : index
    %c0_0 = arith.constant 0 : index
    %c0_1 = arith.constant 0 : index
    %c0_2 = arith.constant 0 : index
    %0 = vector.load %arg1[%c0, %c0_0, %c0_1, %c0_2] : memref<10x1x128x128xf32, #tpu.memory_space<vmem>>, vector<10x1x128x128xf32>
    %1 = vector.shape_cast %0 : vector<10x1x128x128xf32> to vector<10x128x128xf32>
    %2 = tpu.iota {dimensions = array<i32: 0>} : vector<128x128xi32>
    %3 = tpu.iota {dimensions = array<i32: 1>} : vector<128x128xi32>
    %c1_i32 = arith.constant 1 : i32
    %4 = tpu.dynamic_rotate %1 by %c1_i32 dim 1 : vector<10x128x128xf32>, i32 -> vector<10x128x128xf32>
    %c1_i32_3 = arith.constant 1 : i32
    %5 = vector.broadcast %c1_i32_3 : i32 to vector<128x128xi32>
    %6 = arith.cmpi sge, %2, %5 : vector<128x128xi32>
    %cst = arith.constant -2.000000e+01 : f32
    %cst_4 = arith.constant 0.000000e+00 : f32
    %7 = vector.broadcast %cst : f32 to vector<128x128xf32>
    %8 = vector.broadcast %cst_4 : f32 to vector<128x128xf32>
    %9 = arith.select %6, %7, %8 : vector<128x128xi1>, vector<128x128xf32>
    %10 = vector.shape_cast %9 : vector<128x128xf32> to vector<1x128x128xf32>
    %11 = vector.broadcast %10 : vector<1x128x128xf32> to vector<10x128x128xf32>
    %12 = arith.mulf %4, %11 : vector<10x128x128xf32>
    %c1_i32_5 = arith.constant 1 : i32
    %13 = tpu.dynamic_rotate %1 by %c1_i32_5 dim 2 : vector<10x128x128xf32>, i32 -> vector<10x128x128xf32>
    %c1_i32_6 = arith.constant 1 : i32
    %14 = vector.broadcast %c1_i32_6 : i32 to vector<128x128xi32>
    %15 = arith.cmpi sge, %3, %14 : vector<128x128xi32>
    %cst_7 = arith.constant -1.000000e+01 : f32
    %cst_8 = arith.constant 0.000000e+00 : f32
    %16 = vector.broadcast %cst_7 : f32 to vector<128x128xf32>
    %17 = vector.broadcast %cst_8 : f32 to vector<128x128xf32>
    %18 = arith.select %15, %16, %17 : vector<128x128xi1>, vector<128x128xf32>
    %19 = vector.shape_cast %18 : vector<128x128xf32> to vector<1x128x128xf32>
    %20 = vector.broadcast %19 : vector<1x128x128xf32> to vector<10x128x128xf32>
    %21 = arith.mulf %13, %20 : vector<10x128x128xf32>
    %22 = arith.addf %12, %21 : vector<10x128x128xf32>
    %c127_i32 = arith.constant 127 : i32
    %23 = tpu.dynamic_rotate %1 by %c127_i32 dim 2 : vector<10x128x128xf32>, i32 -> vector<10x128x128xf32>
    %c127_i32_9 = arith.constant 127 : i32
    %24 = vector.broadcast %c127_i32_9 : i32 to vector<128x128xi32>
    %25 = arith.cmpi slt, %3, %24 : vector<128x128xi32>
    %cst_10 = arith.constant 1.000000e+01 : f32
    %cst_11 = arith.constant 0.000000e+00 : f32
    %26 = vector.broadcast %cst_10 : f32 to vector<128x128xf32>
    %27 = vector.broadcast %cst_11 : f32 to vector<128x128xf32>
    %28 = arith.select %25, %26, %27 : vector<128x128xi1>, vector<128x128xf32>
    %29 = vector.shape_cast %28 : vector<128x128xf32> to vector<1x128x128xf32>
    %30 = vector.broadcast %29 : vector<1x128x128xf32> to vector<10x128x128xf32>
    %31 = arith.mulf %23, %30 : vector<10x128x128xf32>
    %32 = arith.addf %22, %31 : vector<10x128x128xf32>
    %c127_i32_12 = arith.constant 127 : i32
    %33 = tpu.dynamic_rotate %1 by %c127_i32_12 dim 1 : vector<10x128x128xf32>, i32 -> vector<10x128x128xf32>
    %c127_i32_13 = arith.constant 127 : i32
    %34 = vector.broadcast %c127_i32_13 : i32 to vector<128x128xi32>
    %35 = arith.cmpi slt, %2, %34 : vector<128x128xi32>
    %cst_14 = arith.constant 2.000000e+01 : f32
    %cst_15 = arith.constant 0.000000e+00 : f32
    %36 = vector.broadcast %cst_14 : f32 to vector<128x128xf32>
    %37 = vector.broadcast %cst_15 : f32 to vector<128x128xf32>
    %38 = arith.select %35, %36, %37 : vector<128x128xi1>, vector<128x128xf32>
    %39 = vector.shape_cast %38 : vector<128x128xf32> to vector<1x128x128xf32>
    %40 = vector.broadcast %39 : vector<1x128x128xf32> to vector<10x128x128xf32>
    %41 = arith.mulf %33, %40 : vector<10x128x128xf32>
    %42 = arith.addf %32, %41 : vector<10x128x128xf32>
    %c0_16 = arith.constant 0 : index
    %c0_17 = arith.constant 0 : index
    %c0_18 = arith.constant 0 : index
    %c0_19 = arith.constant 0 : index
    %43 = vector.load %arg2[%c0_16, %c0_17, %c0_18, %c0_19] : memref<10x1x128x128xf32, #tpu.memory_space<vmem>>, vector<10x1x128x128xf32>
    %44 = vector.shape_cast %43 : vector<10x1x128x128xf32> to vector<10x128x128xf32>
    %45 = vector.shape_cast %42 : vector<10x128x128xf32> to vector<10x1x128x128xf32>
    tpu.vector_store %arg2[%c0_16, %c0_17, %c0_18, %c0_19], %45 {strides = array<i32>} : memref<10x1x128x128xf32, #tpu.memory_space<vmem>>, vector<10x1x128x128xf32>,
    return
  }
  func.func @transform_0(%arg0: i32) -> (i32, i32, i32, i32) {
    %c0_i32 = arith.constant 0 : i32
    %c0_i32_0 = arith.constant 0 : i32
    %c0_i32_1 = arith.constant 0 : i32
    %c0_i32_2 = arith.constant 0 : i32
    return %arg0, %c0_i32, %c0_i32_0, %c0_i32_1 : i32, i32, i32, i32
  }
  func.func @transform_1(%arg0: i32) -> (i32, i32, i32, i32) {
    %c0_i32 = arith.constant 0 : i32
    %c0_i32_0 = arith.constant 0 : i32
    %c0_i32_1 = arith.constant 0 : i32
    %c0_i32_2 = arith.constant 0 : i32
    return %arg0, %c0_i32, %c0_i32_0, %c0_i32_1 : i32, i32, i32, i32
  }
}

</mosaic_0001>

<llo_original>
// kernel: tpu_custom_call.1
$region0: #{tpu_custom_call.1}
  #allocation0 [shape = 'u32[]', space=smem, size = 0x4, offset = 0x4, fixed_abs, tag = 'smem constant byte address 0x4 - core index']
  #allocation1 [shape = 'u32[72,128]{1,0:T(1,128)}', space=vmem, size = 0x9000, scoped, tag = 'internal scratch']
  %s0 = inlined_call_operand.hbm [shape: f32[10,1,128,128], index: 0, kind: input, shape index: {}]
  %s1 = inlined_call_operand.hbm [shape: f32[10,1,128,128], index: 1, kind: output, shape index: {}]
  %s2 = sld [smem:[#allocation0]]
  $region18: #{tpu_custom_call.1} parent=0
    _
  %s4 = ssub.s32 1, %s2
  %s5 = scalar_select 0, %s4, %s2
  $region1: #{tpu_custom_call.1} parent=0
    #allocation2 [shape = 'u8[655360]{0}', space=vmem, size = 0xa0000, scoped, tag = 'input window, operand 0, single buffered']
    #allocation3 [shape = 's32[1]{0}', space=sflag, size = 0x4, scoped, tag = 'scoped memory for tpu_custom_call.1']
    #allocation4 [shape = 's32[1]{0}', space=sflag, size = 0x4, scoped, tag = 'scoped memory for tpu_custom_call.1']
    #allocation5 [shape = 'u8[655360]{0}', space=vmem, size = 0xa0000, scoped, tag = 'output window, operand 0, single buffered']
    %6 = vsyncpa [#allocation3], 0
    %7 = vsyncpa [#allocation4], 0
    // Predicated region
    $region2: #{tpu_custom_call.1} parent=1 // pred_check
      _
    $region3: #{tpu_custom_call.1} parent=1 // pred_check_branch
      %9 = sbr.rel (0) target = $region5
    $region4: #{tpu_custom_call.1} parent=1 // pred_region
      %11 = vsyncadd [#allocation3], 0
      %s12 = sshll.u32 %s0, 4
      %s13 = int_to_ptr.hbm [resolvable:$true] %s12
      %s14 = sshll.u32 [#allocation2], 4
      %s15 = int_to_ptr.vmem [resolvable:$true] %s14
      %20 = dma.hbm_to_vmem [thread:$0]  %s13, 20480, %s15, [#allocation3], 128, 128, 8
    $region5: #{tpu_custom_call.1} parent=1 // pred_fallthru
      _
    // Predicated region
    $region6: #{tpu_custom_call.1} parent=1 // pred_check
      _
    $region7: #{tpu_custom_call.1} parent=1 // pred_check_branch
      %22 = sbr.rel (0) target = $region9
    $region8: #{tpu_custom_call.1} parent=1 // pred_region
      %24 = dma.done [#allocation3], 20480
    $region9: #{tpu_custom_call.1} parent=1 // pred_fallthru
      _
    %v25 = vld [vmem:[#allocation2] sm:$0xff]
    %v26 = vld [vmem:[#allocation2 + $0x8] sm:$0xff]
    %v27 = vld [vmem:[#allocation2 + $0x10] sm:$0xff]
    %v28 = vld [vmem:[#allocation2 + $0x18] sm:$0xff]
    %v29 = vld [vmem:[#allocation2 + $0x20] sm:$0xff]
    %v30 = vld [vmem:[#allocation2 + $0x28] sm:$0xff]
    %v31 = vld [vmem:[#allocation2 + $0x30] sm:$0xff]
    %v32 = vld [vmem:[#allocation2 + $0x38] sm:$0xff]
    %v33 = vld [vmem:[#allocation2 + $0x40] sm:$0xff]
    %v34 = vld [vmem:[#allocation2 + $0x48] sm:$0xff]
    %v35 = vld [vmem:[#allocation2 + $0x50] sm:$0xff]
    %v36 = vld [vmem:[#allocation2 + $0x58] sm:$0xff]
    %v37 = vld [vmem:[#allocation2 + $0x60] sm:$0xff]
    %v38 = vld [vmem:[#allocation2 + $0x68] sm:$0xff]
    %v39 = vld [vmem:[#allocation2 + $0x70] sm:$0xff]
    %v40 = vld [vmem:[#allocation2 + $0x78] sm:$0xff]
    %v41 = vld [vmem:[#allocation2 + $0x80] sm:$0xff]
    %v42 = vld [vmem:[#allocation2 + $0x88] sm:$0xff]
    %v43 = vld [vmem:[#allocation2 + $0x90] sm:$0xff]
    %v44 = vld [vmem:[#allocation2 + $0x98] sm:$0xff]
    %v45 = vld [vmem:[#allocation2 + $0xa0] sm:$0xff]
    %v46 = vld [vmem:[#allocation2 + $0xa8] sm:$0xff]
    %v47 = vld [vmem:[#allocation2 + $0xb0] sm:$0xff]
    %v48 = vld [vmem:[#allocation2 + $0xb8] sm:$0xff]
    %v49 = vld [vmem:[#allocation2 + $0xc0] sm:$0xff]
    %v50 = vld [vmem:[#allocation2 + $0xc8] sm:$0xff]
    %v51 = vld [vmem:[#allocation2 + $0xd0] sm:$0xff]
    %v52 = vld [vmem:[#allocation2 + $0xd8] sm:$0xff]
    %v53 = vld [vmem:[#allocation2 + $0xe0] sm:$0xff]
    %v54 = vld [vmem:[#allocation2 + $0xe8] sm:$0xff]
    %v55 = vld [vmem:[#allocation2 + $0xf0] sm:$0xff]
    %v56 = vld [vmem:[#allocation2 + $0xf8] sm:$0xff]
    %v57 = vld [vmem:[#allocation2 + $0x100] sm:$0xff]
    %v58 = vld [vmem:[#allocation2 + $0x108] sm:$0xff]
    %v59 = vld [vmem:[#allocation2 + $0x110] sm:$0xff]
    %v60 = vld [vmem:[#allocation2 + $0x118] sm:$0xff]
    %v61 = vld [vmem:[#allocation2 + $0x120] sm:$0xff]
    %v62 = vld [vmem:[#allocation2 + $0x128] sm:$0xff]
    %v63 = vld [vmem:[#allocation2 + $0x130] sm:$0xff]
    %v64 = vld [vmem:[#allocation2 + $0x138] sm:$0xff]
    %v65 = vld [vmem:[#allocation2 + $0x140] sm:$0xff]
    %v66 = vld [vmem:[#allocation2 + $0x148] sm:$0xff]
    %v67 = vld [vmem:[#allocation2 + $0x150] sm:$0xff]
    %v68 = vld [vmem:[#allocation2 + $0x158] sm:$0xff]
    %v69 = vld [vmem:[#allocation2 + $0x160] sm:$0xff]
    %v70 = vld [vmem:[#allocation2 + $0x168] sm:$0xff]
    %v71 = vld [vmem:[#allocation2 + $0x170] sm:$0xff]
    %v72 = vld [vmem:[#allocation2 + $0x178] sm:$0xff]
    %v73 = vld [vmem:[#allocation2 + $0x180] sm:$0xff]
    %v74 = vld [vmem:[#allocation2 + $0x188] sm:$0xff]
    %v75 = vld [vmem:[#allocation2 + $0x190] sm:$0xff]
    %v76 = vld [vmem:[#allocation2 + $0x198] sm:$0xff]
    %v77 = vld [vmem:[#allocation2 + $0x1a0] sm:$0xff]
    %v78 = vld [vmem:[#allocation2 + $0x1a8] sm:$0xff]
    %v79 = vld [vmem:[#allocation2 + $0x1b0] sm:$0xff]
    %v80 = vld [vmem:[#allocation2 + $0x1b8] sm:$0xff]
    %v81 = vld [vmem:[#allocation2 + $0x1c0] sm:$0xff]
    %v82 = vld [vmem:[#allocation2 + $0x1c8] sm:$0xff]
    %v83 = vld [vmem:[#allocation2 + $0x1d0] sm:$0xff]
    %v84 = vld [vmem:[#allocation2 + $0x1d8] sm:$0xff]
    %v85 = vld [vmem:[#allocation2 + $0x1e0] sm:$0xff]
    %v86 = vld [vmem:[#allocation2 + $0x1e8] sm:$0xff]
    %v87 = vld [vmem:[#allocation2 + $0x1f0] sm:$0xff]
    %v88 = vld [vmem:[#allocation2 + $0x1f8] sm:$0xff]
    %v89 = vld [vmem:[#allocation2 + $0x200] sm:$0xff]
    %v90 = vld [vmem:[#allocation2 + $0x208] sm:$0xff]
    %v91 = vld [vmem:[#allocation2 + $0x210] sm:$0xff]
    %v92 = vld [vmem:[#allocation2 + $0x218] sm:$0xff]
    %v93 = vld [vmem:[#allocation2 + $0x220] sm:$0xff]
    %v94 = vld [vmem:[#allocation2 + $0x228] sm:$0xff]
    %v95 = vld [vmem:[#allocation2 + $0x230] sm:$0xff]
    %v96 = vld [vmem:[#allocation2 + $0x238] sm:$0xff]
    %v97 = vld [vmem:[#allocation2 + $0x240] sm:$0xff]
    %v98 = vld [vmem:[#allocation2 + $0x248] sm:$0xff]
    %v99 = vld [vmem:[#allocation2 + $0x250] sm:$0xff]
    %v100 = vld [vmem:[#allocation2 + $0x258] sm:$0xff]
    %v101 = vld [vmem:[#allocation2 + $0x260] sm:$0xff]
    %v102 = vld [vmem:[#allocation2 + $0x268] sm:$0xff]
    %v103 = vld [vmem:[#allocation2 + $0x270] sm:$0xff]
    %v104 = vld [vmem:[#allocation2 + $0x278] sm:$0xff]
    %v105 = vld [vmem:[#allocation2 + $0x280] sm:$0xff]
    %v106 = vld [vmem:[#allocation2 + $0x288] sm:$0xff]
    %v107 = vld [vmem:[#allocation2 + $0x290] sm:$0xff]
    %v108 = vld [vmem:[#allocation2 + $0x298] sm:$0xff]
    %v109 = vld [vmem:[#allocation2 + $0x2a0] sm:$0xff]
    %v110 = vld [vmem:[#allocation2 + $0x2a8] sm:$0xff]
    %v111 = vld [vmem:[#allocation2 + $0x2b0] sm:$0xff]
    %v112 = vld [vmem:[#allocation2 + $0x2b8] sm:$0xff]
    %v113 = vld [vmem:[#allocation2 + $0x2c0] sm:$0xff]
    %v114 = vld [vmem:[#allocation2 + $0x2c8] sm:$0xff]
    %v115 = vld [vmem:[#allocation2 + $0x2d0] sm:$0xff]
    %v116 = vld [vmem:[#allocation2 + $0x2d8] sm:$0xff]
    %v117 = vld [vmem:[#allocation2 + $0x2e0] sm:$0xff]
    %v118 = vld [vmem:[#allocation2 + $0x2e8] sm:$0xff]
    %v119 = vld [vmem:[#allocation2 + $0x2f0] sm:$0xff]
    %v120 = vld [vmem:[#allocation2 + $0x2f8] sm:$0xff]
    %v121 = vld [vmem:[#allocation2 + $0x300] sm:$0xff]
    %v122 = vld [vmem:[#allocation2 + $0x308] sm:$0xff]
    %v123 = vld [vmem:[#allocation2 + $0x310] sm:$0xff]
    %v124 = vld [vmem:[#allocation2 + $0x318] sm:$0xff]
    %v125 = vld [vmem:[#allocation2 + $0x320] sm:$0xff]
    %v126 = vld [vmem:[#allocation2 + $0x328] sm:$0xff]
    %v127 = vld [vmem:[#allocation2 + $0x330] sm:$0xff]
    %v128 = vld [vmem:[#allocation2 + $0x338] sm:$0xff]
    %v129 = vld [vmem:[#allocation2 + $0x340] sm:$0xff]
    %v130 = vld [vmem:[#allocation2 + $0x348] sm:$0xff]
    %v131 = vld [vmem:[#allocation2 + $0x350] sm:$0xff]
    %v132 = vld [vmem:[#allocation2 + $0x358] sm:$0xff]
    %v133 = vld [vmem:[#allocation2 + $0x360] sm:$0xff]
    %v134 = vld [vmem:[#allocation2 + $0x368] sm:$0xff]
    %v135 = vld [vmem:[#allocation2 + $0x370] sm:$0xff]
    %v136 = vld [vmem:[#allocation2 + $0x378] sm:$0xff]
    %v137 = vld [vmem:[#allocation2 + $0x380] sm:$0xff]
    %v138 = vld [vmem:[#allocation2 + $0x388] sm:$0xff]
    %v139 = vld [vmem:[#allocation2 + $0x390] sm:$0xff]
    %v140 = vld [vmem:[#allocation2 + $0x398] sm:$0xff]
    %v141 = vld [vmem:[#allocation2 + $0x3a0] sm:$0xff]
    %v142 = vld [vmem:[#allocation2 + $0x3a8] sm:$0xff]
    %v143 = vld [vmem:[#allocation2 + $0x3b0] sm:$0xff]
    %v144 = vld [vmem:[#allocation2 + $0x3b8] sm:$0xff]
    %v145 = vld [vmem:[#allocation2 + $0x3c0] sm:$0xff]
    %v146 = vld [vmem:[#allocation2 + $0x3c8] sm:$0xff]
    %v147 = vld [vmem:[#allocation2 + $0x3d0] sm:$0xff]
    %v148 = vld [vmem:[#allocation2 + $0x3d8] sm:$0xff]
    %v149 = vld [vmem:[#allocation2 + $0x3e0] sm:$0xff]
    %v150 = vld [vmem:[#allocation2 + $0x3e8] sm:$0xff]
    %v151 = vld [vmem:[#allocation2 + $0x3f0] sm:$0xff]
    %v152 = vld [vmem:[#allocation2 + $0x3f8] sm:$0xff]
    %v153 = vld [vmem:[#allocation2 + $0x400] sm:$0xff]
    %v154 = vld [vmem:[#allocation2 + $0x408] sm:$0xff]
    %v155 = vld [vmem:[#allocation2 + $0x410] sm:$0xff]
    %v156 = vld [vmem:[#allocation2 + $0x418] sm:$0xff]
    %v157 = vld [vmem:[#allocation2 + $0x420] sm:$0xff]
    %v158 = vld [vmem:[#allocation2 + $0x428] sm:$0xff]
    %v159 = vld [vmem:[#allocation2 + $0x430] sm:$0xff]
    %v160 = vld [vmem:[#allocation2 + $0x438] sm:$0xff]
    %v161 = vld [vmem:[#allocation2 + $0x440] sm:$0xff]
    %v162 = vld [vmem:[#allocation2 + $0x448] sm:$0xff]
    %v163 = vld [vmem:[#allocation2 + $0x450] sm:$0xff]
    %v164 = vld [vmem:[#allocation2 + $0x458] sm:$0xff]
    %v165 = vld [vmem:[#allocation2 + $0x460] sm:$0xff]
    %v166 = vld [vmem:[#allocation2 + $0x468] sm:$0xff]
    %v167 = vld [vmem:[#allocation2 + $0x470] sm:$0xff]
    %v168 = vld [vmem:[#allocation2 + $0x478] sm:$0xff]
    %v169 = vld [vmem:[#allocation2 + $0x480] sm:$0xff]
    %v170 = vld [vmem:[#allocation2 + $0x488] sm:$0xff]
    %v171 = vld [vmem:[#allocation2 + $0x490] sm:$0xff]
    %v172 = vld [vmem:[#allocation2 + $0x498] sm:$0xff]
    %v173 = vld [vmem:[#allocation2 + $0x4a0] sm:$0xff]
    %v174 = vld [vmem:[#allocation2 + $0x4a8] sm:$0xff]
    %v175 = vld [vmem:[#allocation2 + $0x4b0] sm:$0xff]
    %v176 = vld [vmem:[#allocation2 + $0x4b8] sm:$0xff]
    %v177 = vld [vmem:[#allocation2 + $0x4c0] sm:$0xff]
    %v178 = vld [vmem:[#allocation2 + $0x4c8] sm:$0xff]
    %v179 = vld [vmem:[#allocation2 + $0x4d0] sm:$0xff]
    %v180 = vld [vmem:[#allocation2 + $0x4d8] sm:$0xff]
    %v181 = vld [vmem:[#allocation2 + $0x4e0] sm:$0xff]
    %v182 = vld [vmem:[#allocation2 + $0x4e8] sm:$0xff]
    %v183 = vld [vmem:[#allocation2 + $0x4f0] sm:$0xff]
    %v184 = vld [vmem:[#allocation2 + $0x4f8] sm:$0xff]
    %v185 = vlaneseq
    %v186 = vshrl.u32 %v185, 7
    %v187 = vadd.s32 %v186, 8
    %v188 = vadd.s32 %v186, 16
    %v189 = vadd.s32 %v186, 24
    %v190 = vadd.s32 %v186, 32
    %v191 = vadd.s32 %v186, 40
    %v192 = vadd.s32 %v186, 48
    %v193 = vadd.s32 %v186, 56
    %v194 = vadd.s32 %v186, 64
    %v195 = vadd.s32 %v186, 72
    %v196 = vadd.s32 %v186, 80
    %v197 = vadd.s32 %v186, 88
    %v198 = vadd.s32 %v186, 96
    %v199 = vadd.s32 %v186, 104
    %v200 = vadd.s32 %v186, 112
    %v201 = vadd.s32 %v186, 120
    %v202 = vlaneseq
    %v203 = vand.u32 %v202, 127
    %v204 = vrot.slane %v25, 7
    %v205 = vrot.slane %v41, 7
    %v206 = vrot.slane %v57, 7
    %v207 = vrot.slane %v73, 7
    %v208 = vrot.slane %v89, 7
    %v209 = vrot.slane %v105, 7
    %v210 = vrot.slane %v121, 7
    %v211 = vrot.slane %v137, 7
    %v212 = vrot.slane %v153, 7
    %v213 = vrot.slane %v169, 7
    %v214 = vrot.slane %v26, 7
    %v215 = vrot.slane %v42, 7
    %v216 = vrot.slane %v58, 7
    %v217 = vrot.slane %v74, 7
    %v218 = vrot.slane %v90, 7
    %v219 = vrot.slane %v106, 7
    %v220 = vrot.slane %v122, 7
    %v221 = vrot.slane %v138, 7
    %v222 = vrot.slane %v154, 7
    %v223 = vrot.slane %v170, 7
    %v224 = vrot.slane %v27, 7
    %v225 = vrot.slane %v43, 7
    %v226 = vrot.slane %v59, 7
    %v227 = vrot.slane %v75, 7
    %v228 = vrot.slane %v91, 7
    %v229 = vrot.slane %v107, 7
    %v230 = vrot.slane %v123, 7
    %v231 = vrot.slane %v139, 7
    %v232 = vrot.slane %v155, 7
    %v233 = vrot.slane %v171, 7
    %v234 = vrot.slane %v28, 7
    %v235 = vrot.slane %v44, 7
    %v236 = vrot.slane %v60, 7
    %v237 = vrot.slane %v76, 7
    %v238 = vrot.slane %v92, 7
    %v239 = vrot.slane %v108, 7
    %v240 = vrot.slane %v124, 7
    %v241 = vrot.slane %v140, 7
    %v242 = vrot.slane %v156, 7
    %v243 = vrot.slane %v172, 7
    %v244 = vrot.slane %v29, 7
    %v245 = vrot.slane %v45, 7
    %v246 = vrot.slane %v61, 7
    %v247 = vrot.slane %v77, 7
    %v248 = vrot.slane %v93, 7
    %v249 = vrot.slane %v109, 7
    %v250 = vrot.slane %v125, 7
    %v251 = vrot.slane %v141, 7
    %v252 = vrot.slane %v157, 7
    %v253 = vrot.slane %v173, 7
    %v254 = vrot.slane %v30, 7
    %v255 = vrot.slane %v46, 7
    %v256 = vrot.slane %v62, 7
    %v257 = vrot.slane %v78, 7
    %v258 = vrot.slane %v94, 7
    %v259 = vrot.slane %v110, 7
    %v260 = vrot.slane %v126, 7
    %v261 = vrot.slane %v142, 7
    %v262 = vrot.slane %v158, 7
    %v263 = vrot.slane %v174, 7
    %v264 = vrot.slane %v31, 7
    %v265 = vrot.slane %v47, 7
    %v266 = vrot.slane %v63, 7
    %v267 = vrot.slane %v79, 7
    %v268 = vrot.slane %v95, 7
    %v269 = vrot.slane %v111, 7
    %v270 = vrot.slane %v127, 7
    %v271 = vrot.slane %v143, 7
    %v272 = vrot.slane %v159, 7
    %v273 = vrot.slane %v175, 7
    %v274 = vrot.slane %v32, 7
    %v275 = vrot.slane %v48, 7
    %v276 = vrot.slane %v64, 7
    %v277 = vrot.slane %v80, 7
    %v278 = vrot.slane %v96, 7
    %v279 = vrot.slane %v112, 7
    %v280 = vrot.slane %v128, 7
    %v281 = vrot.slane %v144, 7
    %v282 = vrot.slane %v160, 7
    %v283 = vrot.slane %v176, 7
    %v284 = vrot.slane %v33, 7
    %v285 = vrot.slane %v49, 7
    %v286 = vrot.slane %v65, 7
    %v287 = vrot.slane %v81, 7
    %v288 = vrot.slane %v97, 7
    %v289 = vrot.slane %v113, 7
    %v290 = vrot.slane %v129, 7
    %v291 = vrot.slane %v145, 7
    %v292 = vrot.slane %v161, 7
    %v293 = vrot.slane %v177, 7
    %v294 = vrot.slane %v34, 7
    %v295 = vrot.slane %v50, 7
    %v296 = vrot.slane %v66, 7
    %v297 = vrot.slane %v82, 7
    %v298 = vrot.slane %v98, 7
    %v299 = vrot.slane %v114, 7
    %v300 = vrot.slane %v130, 7
    %v301 = vrot.slane %v146, 7
    %v302 = vrot.slane %v162, 7
    %v303 = vrot.slane %v178, 7
    %v304 = vrot.slane %v35, 7
    %v305 = vrot.slane %v51, 7
    %v306 = vrot.slane %v67, 7
    %v307 = vrot.slane %v83, 7
    %v308 = vrot.slane %v99, 7
    %v309 = vrot.slane %v115, 7
    %v310 = vrot.slane %v131, 7
    %v311 = vrot.slane %v147, 7
    %v312 = vrot.slane %v163, 7
    %v313 = vrot.slane %v179, 7
    %v314 = vrot.slane %v36, 7
    %v315 = vrot.slane %v52, 7
    %v316 = vrot.slane %v68, 7
    %v317 = vrot.slane %v84, 7
    %v318 = vrot.slane %v100, 7
    %v319 = vrot.slane %v116, 7
    %v320 = vrot.slane %v132, 7
    %v321 = vrot.slane %v148, 7
    %v322 = vrot.slane %v164, 7
    %v323 = vrot.slane %v180, 7
    %v324 = vrot.slane %v37, 7
    %v325 = vrot.slane %v53, 7
    %v326 = vrot.slane %v69, 7
    %v327 = vrot.slane %v85, 7
    %v328 = vrot.slane %v101, 7
    %v329 = vrot.slane %v117, 7
    %v330 = vrot.slane %v133, 7
    %v331 = vrot.slane %v149, 7
    %v332 = vrot.slane %v165, 7
    %v333 = vrot.slane %v181, 7
    %v334 = vrot.slane %v38, 7
    %v335 = vrot.slane %v54, 7
    %v336 = vrot.slane %v70, 7
    %v337 = vrot.slane %v86, 7
    %v338 = vrot.slane %v102, 7
    %v339 = vrot.slane %v118, 7
    %v340 = vrot.slane %v134, 7
    %v341 = vrot.slane %v150, 7
    %v342 = vrot.slane %v166, 7
    %v343 = vrot.slane %v182, 7
    %v344 = vrot.slane %v39, 7
    %v345 = vrot.slane %v55, 7
    %v346 = vrot.slane %v71, 7
    %v347 = vrot.slane %v87, 7
    %v348 = vrot.slane %v103, 7
    %v349 = vrot.slane %v119, 7
    %v350 = vrot.slane %v135, 7
    %v351 = vrot.slane %v151, 7
    %v352 = vrot.slane %v167, 7
    %v353 = vrot.slane %v183, 7
    %v354 = vrot.slane %v40, 7
    %v355 = vrot.slane %v56, 7
    %v356 = vrot.slane %v72, 7
    %v357 = vrot.slane %v88, 7
    %v358 = vrot.slane %v104, 7
    %v359 = vrot.slane %v120, 7
    %v360 = vrot.slane %v136, 7
    %v361 = vrot.slane %v152, 7
    %v362 = vrot.slane %v168, 7
    %v363 = vrot.slane %v184, 7
    %vm364 = vcmp.lt.s32.totalorder %v186, 1
    %v365 = vsel %vm364, %v344, %v354
    %v366 = vsel %vm364, %v345, %v355
    %v367 = vsel %vm364, %v346, %v356
    %v368 = vsel %vm364, %v347, %v357
    %v369 = vsel %vm364, %v348, %v358
    %v370 = vsel %vm364, %v349, %v359
    %v371 = vsel %vm364, %v350, %v360
    %v372 = vsel %vm364, %v351, %v361
    %v373 = vsel %vm364, %v352, %v362
    %v374 = vsel %vm364, %v353, %v363
    %v375 = vsel %vm364, %v334, %v344
    %v376 = vsel %vm364, %v335, %v345
    %v377 = vsel %vm364, %v336, %v346
    %v378 = vsel %vm364, %v337, %v347
    %v379 = vsel %vm364, %v338, %v348
    %v380 = vsel %vm364, %v339, %v349
    %v381 = vsel %vm364, %v340, %v350
    %v382 = vsel %vm364, %v341, %v351
    %v383 = vsel %vm364, %v342, %v352
    %v384 = vsel %vm364, %v343, %v353
    %v385 = vsel %vm364, %v324, %v334
    %v386 = vsel %vm364, %v325, %v335
    %v387 = vsel %vm364, %v326, %v336
    %v388 = vsel %vm364, %v327, %v337
    %v389 = vsel %vm364, %v328, %v338
    %v390 = vsel %vm364, %v329, %v339
    %v391 = vsel %vm364, %v330, %v340
    %v392 = vsel %vm364, %v331, %v341
    %v393 = vsel %vm364, %v332, %v342
    %v394 = vsel %vm364, %v333, %v343
    %v395 = vsel %vm364, %v314, %v324
    %v396 = vsel %vm364, %v315, %v325
    %v397 = vsel %vm364, %v316, %v326
    %v398 = vsel %vm364, %v317, %v327
    %v399 = vsel %vm364, %v318, %v328
    %v400 = vsel %vm364, %v319, %v329
    %v401 = vsel %vm364, %v320, %v330
    %v402 = vsel %vm364, %v321, %v331
    %v403 = vsel %vm364, %v322, %v332
    %v404 = vsel %vm364, %v323, %v333
    %v405 = vsel %vm364, %v304, %v314
    %v406 = vsel %vm364, %v305, %v315
    %v407 = vsel %vm364, %v306, %v316
    %v408 = vsel %vm364, %v307, %v317
    %v409 = vsel %vm364, %v308, %v318
    %v410 = vsel %vm364, %v309, %v319
    %v411 = vsel %vm364, %v310, %v320
    %v412 = vsel %vm364, %v311, %v321
    %v413 = vsel %vm364, %v312, %v322
    %v414 = vsel %vm364, %v313, %v323
    %v415 = vsel %vm364, %v294, %v304
    %v416 = vsel %vm364, %v295, %v305
    %v417 = vsel %vm364, %v296, %v306
    %v418 = vsel %vm364, %v297, %v307
    %v419 = vsel %vm364, %v298, %v308
    %v420 = vsel %vm364, %v299, %v309
    %v421 = vsel %vm364, %v300, %v310
    %v422 = vsel %vm364, %v301, %v311
    %v423 = vsel %vm364, %v302, %v312
    %v424 = vsel %vm364, %v303, %v313
    %v425 = vsel %vm364, %v284, %v294
    %v426 = vsel %vm364, %v285, %v295
    %v427 = vsel %vm364, %v286, %v296
    %v428 = vsel %vm364, %v287, %v297
    %v429 = vsel %vm364, %v288, %v298
    %v430 = vsel %vm364, %v289, %v299
    %v431 = vsel %vm364, %v290, %v300
    %v432 = vsel %vm364, %v291, %v301
    %v433 = vsel %vm364, %v292, %v302
    %v434 = vsel %vm364, %v293, %v303
    %v435 = vsel %vm364, %v274, %v284
    %v436 = vsel %vm364, %v275, %v285
    %v437 = vsel %vm364, %v276, %v286
    %v438 = vsel %vm364, %v277, %v287
    %v439 = vsel %vm364, %v278, %v288
    %v440 = vsel %vm364, %v279, %v289
    %v441 = vsel %vm364, %v280, %v290
    %v442 = vsel %vm364, %v281, %v291
    %v443 = vsel %vm364, %v282, %v292
    %v444 = vsel %vm364, %v283, %v293
    %v445 = vsel %vm364, %v264, %v274
    %v446 = vsel %vm364, %v265, %v275
    %v447 = vsel %vm364, %v266, %v276
    %v448 = vsel %vm364, %v267, %v277
    %v449 = vsel %vm364, %v268, %v278
    %v450 = vsel %vm364, %v269, %v279
    %v451 = vsel %vm364, %v270, %v280
    %v452 = vsel %vm364, %v271, %v281
    %v453 = vsel %vm364, %v272, %v282
    %v454 = vsel %vm364, %v273, %v283
    %v455 = vsel %vm364, %v254, %v264
    %v456 = vsel %vm364, %v255, %v265
    %v457 = vsel %vm364, %v256, %v266
    %v458 = vsel %vm364, %v257, %v267
    %v459 = vsel %vm364, %v258, %v268
    %v460 = vsel %vm364, %v259, %v269
    %v461 = vsel %vm364, %v260, %v270
    %v462 = vsel %vm364, %v261, %v271
    %v463 = vsel %vm364, %v262, %v272
    %v464 = vsel %vm364, %v263, %v273
    %v465 = vsel %vm364, %v244, %v254
    %v466 = vsel %vm364, %v245, %v255
    %v467 = vsel %vm364, %v246, %v256
    %v468 = vsel %vm364, %v247, %v257
    %v469 = vsel %vm364, %v248, %v258
    %v470 = vsel %vm364, %v249, %v259
    %v471 = vsel %vm364, %v250, %v260
    %v472 = vsel %vm364, %v251, %v261
    %v473 = vsel %vm364, %v252, %v262
    %v474 = vsel %vm364, %v253, %v263
    %v475 = vsel %vm364, %v234, %v244
    %v476 = vsel %vm364, %v235, %v245
    %v477 = vsel %vm364, %v236, %v246
    %v478 = vsel %vm364, %v237, %v247
    %v479 = vsel %vm364, %v238, %v248
    %v480 = vsel %vm364, %v239, %v249
    %v481 = vsel %vm364, %v240, %v250
    %v482 = vsel %vm364, %v241, %v251
    %v483 = vsel %vm364, %v242, %v252
    %v484 = vsel %vm364, %v243, %v253
    %v485 = vsel %vm364, %v224, %v234
    %v486 = vsel %vm364, %v225, %v235
    %v487 = vsel %vm364, %v226, %v236
    %v488 = vsel %vm364, %v227, %v237
    %v489 = vsel %vm364, %v228, %v238
    %v490 = vsel %vm364, %v229, %v239
    %v491 = vsel %vm364, %v230, %v240
    %v492 = vsel %vm364, %v231, %v241
    %v493 = vsel %vm364, %v232, %v242
    %v494 = vsel %vm364, %v233, %v243
    %v495 = vsel %vm364, %v214, %v224
    %v496 = vsel %vm364, %v215, %v225
    %v497 = vsel %vm364, %v216, %v226
    %v498 = vsel %vm364, %v217, %v227
    %v499 = vsel %vm364, %v218, %v228
    %v500 = vsel %vm364, %v219, %v229
    %v501 = vsel %vm364, %v220, %v230
    %v502 = vsel %vm364, %v221, %v231
    %v503 = vsel %vm364, %v222, %v232
    %v504 = vsel %vm364, %v223, %v233
    %v505 = vsel %vm364, %v204, %v214
    %v506 = vsel %vm364, %v205, %v215
    %v507 = vsel %vm364, %v206, %v216
    %v508 = vsel %vm364, %v207, %v217
    %v509 = vsel %vm364, %v208, %v218
    %v510 = vsel %vm364, %v209, %v219
    %v511 = vsel %vm364, %v210, %v220
    %v512 = vsel %vm364, %v211, %v221
    %v513 = vsel %vm364, %v212, %v222
    %v514 = vsel %vm364, %v213, %v223
    %v515 = vsel %vm364, %v354, %v204
    %v516 = vsel %vm364, %v355, %v205
    %v517 = vsel %vm364, %v356, %v206
    %v518 = vsel %vm364, %v357, %v207
    %v519 = vsel %vm364, %v358, %v208
    %v520 = vsel %vm364, %v359, %v209
    %v521 = vsel %vm364, %v360, %v210
    %v522 = vsel %vm364, %v361, %v211
    %v523 = vsel %vm364, %v362, %v212
    %v524 = vsel %vm364, %v363, %v213
    %vm525 = vcmp.ge.s32.totalorder %v186, 1
    %vm526 = vcmp.ge.s32.totalorder %v187, 1
    %vm527 = vcmp.ge.s32.totalorder %v188, 1
    %vm528 = vcmp.ge.s32.totalorder %v189, 1
    %vm529 = vcmp.ge.s32.totalorder %v190, 1
    %vm530 = vcmp.ge.s32.totalorder %v191, 1
    %vm531 = vcmp.ge.s32.totalorder %v192, 1
    %vm532 = vcmp.ge.s32.totalorder %v193, 1
    %vm533 = vcmp.ge.s32.totalorder %v194, 1
    %vm534 = vcmp.ge.s32.totalorder %v195, 1
    %vm535 = vcmp.ge.s32.totalorder %v196, 1
    %vm536 = vcmp.ge.s32.totalorder %v197, 1
    %vm537 = vcmp.ge.s32.totalorder %v198, 1
    %vm538 = vcmp.ge.s32.totalorder %v199, 1
    %vm539 = vcmp.ge.s32.totalorder %v200, 1
    %vm540 = vcmp.ge.s32.totalorder %v201, 1
    %v541 = vsel %vm525, -20.0, 0.0
    %v542 = vsel %vm526, -20.0, 0.0
    %v543 = vsel %vm527, -20.0, 0.0
    %v544 = vsel %vm528, -20.0, 0.0
    %v545 = vsel %vm529, -20.0, 0.0
    %v546 = vsel %vm530, -20.0, 0.0
    %v547 = vsel %vm531, -20.0, 0.0
    %v548 = vsel %vm532, -20.0, 0.0
    %v549 = vsel %vm533, -20.0, 0.0
    %v550 = vsel %vm534, -20.0, 0.0
    %v551 = vsel %vm535, -20.0, 0.0
    %v552 = vsel %vm536, -20.0, 0.0
    %v553 = vsel %vm537, -20.0, 0.0
    %v554 = vsel %vm538, -20.0, 0.0
    %v555 = vsel %vm539, -20.0, 0.0
    %v556 = vsel %vm540, -20.0, 0.0
    %v557 = vmul.f32 %v515, %v541
    %v558 = vmul.f32 %v505, %v542
    %v559 = vmul.f32 %v495, %v543
    %v560 = vmul.f32 %v485, %v544
    %v561 = vmul.f32 %v475, %v545
    %v562 = vmul.f32 %v465, %v546
    %v563 = vmul.f32 %v455, %v547
    %v564 = vmul.f32 %v445, %v548
    %v565 = vmul.f32 %v435, %v549
    %v566 = vmul.f32 %v425, %v550
    %v567 = vmul.f32 %v415, %v551
    %v568 = vmul.f32 %v405, %v552
    %v569 = vmul.f32 %v395, %v553
    %v570 = vmul.f32 %v385, %v554
    %v571 = vmul.f32 %v375, %v555
    %v572 = vmul.f32 %v365, %v556
    %v573 = vmul.f32 %v516, %v541
    %v574 = vmul.f32 %v506, %v542
    %v575 = vmul.f32 %v496, %v543
    %v576 = vmul.f32 %v486, %v544
    %v577 = vmul.f32 %v476, %v545
    %v578 = vmul.f32 %v466, %v546
    %v579 = vmul.f32 %v456, %v547
    %v580 = vmul.f32 %v446, %v548
    %v581 = vmul.f32 %v436, %v549
    %v582 = vmul.f32 %v426, %v550
    %v583 = vmul.f32 %v416, %v551
    %v584 = vmul.f32 %v406, %v552
    %v585 = vmul.f32 %v396, %v553
    %v586 = vmul.f32 %v386, %v554
    %v587 = vmul.f32 %v376, %v555
    %v588 = vmul.f32 %v366, %v556
    %v589 = vmul.f32 %v517, %v541
    %v590 = vmul.f32 %v507, %v542
    %v591 = vmul.f32 %v497, %v543
    %v592 = vmul.f32 %v487, %v544
    %v593 = vmul.f32 %v477, %v545
    %v594 = vmul.f32 %v467, %v546
    %v595 = vmul.f32 %v457, %v547
    %v596 = vmul.f32 %v447, %v548
    %v597 = vmul.f32 %v437, %v549
    %v598 = vmul.f32 %v427, %v550
    %v599 = vmul.f32 %v417, %v551
    %v600 = vmul.f32 %v407, %v552
    %v601 = vmul.f32 %v397, %v553
    %v602 = vmul.f32 %v387, %v554
    %v603 = vmul.f32 %v377, %v555
    %v604 = vmul.f32 %v367, %v556
    %v605 = vmul.f32 %v518, %v541
    %v606 = vmul.f32 %v508, %v542
    %v607 = vmul.f32 %v498, %v543
    %v608 = vmul.f32 %v488, %v544
    %v609 = vmul.f32 %v478, %v545
    %v610 = vmul.f32 %v468, %v546
    %v611 = vmul.f32 %v458, %v547
    %v612 = vmul.f32 %v448, %v548
    %v613 = vmul.f32 %v438, %v549
    %v614 = vmul.f32 %v428, %v550
    %v615 = vmul.f32 %v418, %v551
    %v616 = vmul.f32 %v408, %v552
    %v617 = vmul.f32 %v398, %v553
    %v618 = vmul.f32 %v388, %v554
    %v619 = vmul.f32 %v378, %v555
    %v620 = vmul.f32 %v368, %v556
    %v621 = vmul.f32 %v519, %v541
    %v622 = vmul.f32 %v509, %v542
    %v623 = vmul.f32 %v499, %v543
    %v624 = vmul.f32 %v489, %v544
    %v625 = vmul.f32 %v479, %v545
    %v626 = vmul.f32 %v469, %v546
    %v627 = vmul.f32 %v459, %v547
    %v628 = vmul.f32 %v449, %v548
    %v629 = vmul.f32 %v439, %v549
    %v630 = vmul.f32 %v429, %v550
    %v631 = vmul.f32 %v419, %v551
    %v632 = vmul.f32 %v409, %v552
    %v633 = vmul.f32 %v399, %v553
    %v634 = vmul.f32 %v389, %v554
    %v635 = vmul.f32 %v379, %v555
    %v636 = vmul.f32 %v369, %v556
    %v637 = vmul.f32 %v520, %v541
    %v638 = vmul.f32 %v510, %v542
    %v639 = vmul.f32 %v500, %v543
    %v640 = vmul.f32 %v490, %v544
    %v641 = vmul.f32 %v480, %v545
    %v642 = vmul.f32 %v470, %v546
    %v643 = vmul.f32 %v460, %v547
    %v644 = vmul.f32 %v450, %v548
    %v645 = vmul.f32 %v440, %v549
    %v646 = vmul.f32 %v430, %v550
    %v647 = vmul.f32 %v420, %v551
    %v648 = vmul.f32 %v410, %v552
    %v649 = vmul.f32 %v400, %v553
    %v650 = vmul.f32 %v390, %v554
    %v651 = vmul.f32 %v380, %v555
    %v652 = vmul.f32 %v370, %v556
    %v653 = vmul.f32 %v521, %v541
    %v654 = vmul.f32 %v511, %v542
    %v655 = vmul.f32 %v501, %v543
    %v656 = vmul.f32 %v491, %v544
    %v657 = vmul.f32 %v481, %v545
    %v658 = vmul.f32 %v471, %v546
    %v659 = vmul.f32 %v461, %v547
    %v660 = vmul.f32 %v451, %v548
    %v661 = vmul.f32 %v441, %v549
    %v662 = vmul.f32 %v431, %v550
    %v663 = vmul.f32 %v421, %v551
    %v664 = vmul.f32 %v411, %v552
    %v665 = vmul.f32 %v401, %v553
    %v666 = vmul.f32 %v391, %v554
    %v667 = vmul.f32 %v381, %v555
    %v668 = vmul.f32 %v371, %v556
    %v669 = vmul.f32 %v522, %v541
    %v670 = vmul.f32 %v512, %v542
    %v671 = vmul.f32 %v502, %v543
    %v672 = vmul.f32 %v492, %v544
    %v673 = vmul.f32 %v482, %v545
    %v674 = vmul.f32 %v472, %v546
    %v675 = vmul.f32 %v462, %v547
    %v676 = vmul.f32 %v452, %v548
    %v677 = vmul.f32 %v442, %v549
    %v678 = vmul.f32 %v432, %v550
    %v679 = vmul.f32 %v422, %v551
    %v680 = vmul.f32 %v412, %v552
    %v681 = vmul.f32 %v402, %v553
    %v682 = vmul.f32 %v392, %v554
    %v683 = vmul.f32 %v382, %v555
    %v684 = vmul.f32 %v372, %v556
    %v685 = vmul.f32 %v523, %v541
    %v686 = vmul.f32 %v513, %v542
    %v687 = vmul.f32 %v503, %v543
    %v688 = vmul.f32 %v493, %v544
    %v689 = vmul.f32 %v483, %v545
    %v690 = vmul.f32 %v473, %v546
    %v691 = vmul.f32 %v463, %v547
    %v692 = vmul.f32 %v453, %v548
    %v693 = vmul.f32 %v443, %v549
    %v694 = vmul.f32 %v433, %v550
    %v695 = vmul.f32 %v423, %v551
    %v696 = vmul.f32 %v413, %v552
    %v697 = vmul.f32 %v403, %v553
    %v698 = vmul.f32 %v393, %v554
    %v699 = vmul.f32 %v383, %v555
    %v700 = vmul.f32 %v373, %v556
    %v701 = vmul.f32 %v524, %v541
    %v702 = vmul.f32 %v514, %v542
    %v703 = vmul.f32 %v504, %v543
    %v704 = vmul.f32 %v494, %v544
    %v705 = vmul.f32 %v484, %v545
    %v706 = vmul.f32 %v474, %v546
    %v707 = vmul.f32 %v464, %v547
    %v708 = vmul.f32 %v454, %v548
    %v709 = vmul.f32 %v444, %v549
    %v710 = vmul.f32 %v434, %v550
    %v711 = vmul.f32 %v424, %v551
    %v712 = vmul.f32 %v414, %v552
    %v713 = vmul.f32 %v404, %v553
    %v714 = vmul.f32 %v394, %v554
    %v715 = vmul.f32 %v384, %v555
    %v716 = vmul.f32 %v374, %v556
    %717 = vrot.lane.b32.xlu0 %v25, 1
    %v718 = vpop.permute.xlu0 %717
    %719 = vrot.lane.b32.xlu0 %v26, 1
    %v720 = vpop.permute.xlu0 %719
    %721 = vrot.lane.b32.xlu0 %v27, 1
    %v722 = vpop.permute.xlu0 %721
    %723 = vrot.lane.b32.xlu0 %v28, 1
    %v724 = vpop.permute.xlu0 %723
    %725 = vrot.lane.b32.xlu0 %v29, 1
    %v726 = vpop.permute.xlu0 %725
    %727 = vrot.lane.b32.xlu0 %v30, 1
    %v728 = vpop.permute.xlu0 %727
    %729 = vrot.lane.b32.xlu0 %v31, 1
    %v730 = vpop.permute.xlu0 %729
    %731 = vrot.lane.b32.xlu0 %v32, 1
    %v732 = vpop.permute.xlu0 %731
    %733 = vrot.lane.b32.xlu0 %v33, 1
    %v734 = vpop.permute.xlu0 %733
    %735 = vrot.lane.b32.xlu0 %v34, 1
    %v736 = vpop.permute.xlu0 %735
    %737 = vrot.lane.b32.xlu0 %v35, 1
    %v738 = vpop.permute.xlu0 %737
    %739 = vrot.lane.b32.xlu0 %v36, 1
    %v740 = vpop.permute.xlu0 %739
    %741 = vrot.lane.b32.xlu0 %v37, 1
    %v742 = vpop.permute.xlu0 %741
    %743 = vrot.lane.b32.xlu0 %v38, 1
    %v744 = vpop.permute.xlu0 %743
    %745 = vrot.lane.b32.xlu0 %v39, 1
    %v746 = vpop.permute.xlu0 %745
    %747 = vrot.lane.b32.xlu0 %v40, 1
    %v748 = vpop.permute.xlu0 %747
    %749 = vrot.lane.b32.xlu0 %v41, 1
    %v750 = vpop.permute.xlu0 %749
    %751 = vrot.lane.b32.xlu0 %v42, 1
    %v752 = vpop.permute.xlu0 %751
    %753 = vrot.lane.b32.xlu0 %v43, 1
    %v754 = vpop.permute.xlu0 %753
    %755 = vrot.lane.b32.xlu0 %v44, 1
    %v756 = vpop.permute.xlu0 %755
    %757 = vrot.lane.b32.xlu0 %v45, 1
    %v758 = vpop.permute.xlu0 %757
    %759 = vrot.lane.b32.xlu0 %v46, 1
    %v760 = vpop.permute.xlu0 %759
    %761 = vrot.lane.b32.xlu0 %v47, 1
    %v762 = vpop.permute.xlu0 %761
    %763 = vrot.lane.b32.xlu0 %v48, 1
    %v764 = vpop.permute.xlu0 %763
    %765 = vrot.lane.b32.xlu0 %v49, 1
    %v766 = vpop.permute.xlu0 %765
    %767 = vrot.lane.b32.xlu0 %v50, 1
    %v768 = vpop.permute.xlu0 %767
    %769 = vrot.lane.b32.xlu0 %v51, 1
    %v770 = vpop.permute.xlu0 %769
    %771 = vrot.lane.b32.xlu0 %v52, 1
    %v772 = vpop.permute.xlu0 %771
    %773 = vrot.lane.b32.xlu0 %v53, 1
    %v774 = vpop.permute.xlu0 %773
    %775 = vrot.lane.b32.xlu0 %v54, 1
    %v776 = vpop.permute.xlu0 %775
    %777 = vrot.lane.b32.xlu0 %v55, 1
    %v778 = vpop.permute.xlu0 %777
    %779 = vrot.lane.b32.xlu0 %v56, 1
    %v780 = vpop.permute.xlu0 %779
    %781 = vrot.lane.b32.xlu0 %v57, 1
    %v782 = vpop.permute.xlu0 %781
    %783 = vrot.lane.b32.xlu0 %v58, 1
    %v784 = vpop.permute.xlu0 %783
    %785 = vrot.lane.b32.xlu0 %v59, 1
    %v786 = vpop.permute.xlu0 %785
    %787 = vrot.lane.b32.xlu0 %v60, 1
    %v788 = vpop.permute.xlu0 %787
    %789 = vrot.lane.b32.xlu0 %v61, 1
    %v790 = vpop.permute.xlu0 %789
    %791 = vrot.lane.b32.xlu0 %v62, 1
    %v792 = vpop.permute.xlu0 %791
    %793 = vrot.lane.b32.xlu0 %v63, 1
    %v794 = vpop.permute.xlu0 %793
    %795 = vrot.lane.b32.xlu0 %v64, 1
    %v796 = vpop.permute.xlu0 %795
    %797 = vrot.lane.b32.xlu0 %v65, 1
    %v798 = vpop.permute.xlu0 %797
    %799 = vrot.lane.b32.xlu0 %v66, 1
    %v800 = vpop.permute.xlu0 %799
    %801 = vrot.lane.b32.xlu0 %v67, 1
    %v802 = vpop.permute.xlu0 %801
    %803 = vrot.lane.b32.xlu0 %v68, 1
    %v804 = vpop.permute.xlu0 %803
    %805 = vrot.lane.b32.xlu0 %v69, 1
    %v806 = vpop.permute.xlu0 %805
    %807 = vrot.lane.b32.xlu0 %v70, 1
    %v808 = vpop.permute.xlu0 %807
    %809 = vrot.lane.b32.xlu0 %v71, 1
    %v810 = vpop.permute.xlu0 %809
    %811 = vrot.lane.b32.xlu0 %v72, 1
    %v812 = vpop.permute.xlu0 %811
    %813 = vrot.lane.b32.xlu0 %v73, 1
    %v814 = vpop.permute.xlu0 %813
    %815 = vrot.lane.b32.xlu0 %v74, 1
    %v816 = vpop.permute.xlu0 %815
    %817 = vrot.lane.b32.xlu0 %v75, 1
    %v818 = vpop.permute.xlu0 %817
    %819 = vrot.lane.b32.xlu0 %v76, 1
    %v820 = vpop.permute.xlu0 %819
    %821 = vrot.lane.b32.xlu0 %v77, 1
    %v822 = vpop.permute.xlu0 %821
    %823 = vrot.lane.b32.xlu0 %v78, 1
    %v824 = vpop.permute.xlu0 %823
    %825 = vrot.lane.b32.xlu0 %v79, 1
    %v826 = vpop.permute.xlu0 %825
    %827 = vrot.lane.b32.xlu0 %v80, 1
    %v828 = vpop.permute.xlu0 %827
    %829 = vrot.lane.b32.xlu0 %v81, 1
    %v830 = vpop.permute.xlu0 %829
    %831 = vrot.lane.b32.xlu0 %v82, 1
    %v832 = vpop.permute.xlu0 %831
    %833 = vrot.lane.b32.xlu0 %v83, 1
    %v834 = vpop.permute.xlu0 %833
    %835 = vrot.lane.b32.xlu0 %v84, 1
    %v836 = vpop.permute.xlu0 %835
    %837 = vrot.lane.b32.xlu0 %v85, 1
    %v838 = vpop.permute.xlu0 %837
    %839 = vrot.lane.b32.xlu0 %v86, 1
    %v840 = vpop.permute.xlu0 %839
    %841 = vrot.lane.b32.xlu0 %v87, 1
    %v842 = vpop.permute.xlu0 %841
    %843 = vrot.lane.b32.xlu0 %v88, 1
    %v844 = vpop.permute.xlu0 %843
    %845 = vrot.lane.b32.xlu0 %v89, 1
    %v846 = vpop.permute.xlu0 %845
    %847 = vrot.lane.b32.xlu0 %v90, 1
    %v848 = vpop.permute.xlu0 %847
    %849 = vrot.lane.b32.xlu0 %v91, 1
    %v850 = vpop.permute.xlu0 %849
    %851 = vrot.lane.b32.xlu0 %v92, 1
    %v852 = vpop.permute.xlu0 %851
    %853 = vrot.lane.b32.xlu0 %v93, 1
    %v854 = vpop.permute.xlu0 %853
    %855 = vrot.lane.b32.xlu0 %v94, 1
    %v856 = vpop.permute.xlu0 %855
    %857 = vrot.lane.b32.xlu0 %v95, 1
    %v858 = vpop.permute.xlu0 %857
    %859 = vrot.lane.b32.xlu0 %v96, 1
    %v860 = vpop.permute.xlu0 %859
    %861 = vrot.lane.b32.xlu0 %v97, 1
    %v862 = vpop.permute.xlu0 %861
    %863 = vrot.lane.b32.xlu0 %v98, 1
    %v864 = vpop.permute.xlu0 %863
    %865 = vrot.lane.b32.xlu0 %v99, 1
    %v866 = vpop.permute.xlu0 %865
    %867 = vrot.lane.b32.xlu0 %v100, 1
    %v868 = vpop.permute.xlu0 %867
    %869 = vrot.lane.b32.xlu0 %v101, 1
    %v870 = vpop.permute.xlu0 %869
    %871 = vrot.lane.b32.xlu0 %v102, 1
    %v872 = vpop.permute.xlu0 %871
    %873 = vrot.lane.b32.xlu0 %v103, 1
    %v874 = vpop.permute.xlu0 %873
    %875 = vrot.lane.b32.xlu0 %v104, 1
    %v876 = vpop.permute.xlu0 %875
    %877 = vrot.lane.b32.xlu0 %v105, 1
    %v878 = vpop.permute.xlu0 %877
    %879 = vrot.lane.b32.xlu0 %v106, 1
    %v880 = vpop.permute.xlu0 %879
    %881 = vrot.lane.b32.xlu0 %v107, 1
    %v882 = vpop.permute.xlu0 %881
    %883 = vrot.lane.b32.xlu0 %v108, 1
    %v884 = vpop.permute.xlu0 %883
    %885 = vrot.lane.b32.xlu0 %v109, 1
    %v886 = vpop.permute.xlu0 %885
    %887 = vrot.lane.b32.xlu0 %v110, 1
    %v888 = vpop.permute.xlu0 %887
    %889 = vrot.lane.b32.xlu0 %v111, 1
    %v890 = vpop.permute.xlu0 %889
    %891 = vrot.lane.b32.xlu0 %v112, 1
    %v892 = vpop.permute.xlu0 %891
    %893 = vrot.lane.b32.xlu0 %v113, 1
    %v894 = vpop.permute.xlu0 %893
    %895 = vrot.lane.b32.xlu0 %v114, 1
    %v896 = vpop.permute.xlu0 %895
    %897 = vrot.lane.b32.xlu0 %v115, 1
    %v898 = vpop.permute.xlu0 %897
    %899 = vrot.lane.b32.xlu0 %v116, 1
    %v900 = vpop.permute.xlu0 %899
    %901 = vrot.lane.b32.xlu0 %v117, 1
    %v902 = vpop.permute.xlu0 %901
    %903 = vrot.lane.b32.xlu0 %v118, 1
    %v904 = vpop.permute.xlu0 %903
    %905 = vrot.lane.b32.xlu0 %v119, 1
    %v906 = vpop.permute.xlu0 %905
    %907 = vrot.lane.b32.xlu0 %v120, 1
    %v908 = vpop.permute.xlu0 %907
    %909 = vrot.lane.b32.xlu0 %v121, 1
    %v910 = vpop.permute.xlu0 %909
    %911 = vrot.lane.b32.xlu0 %v122, 1
    %v912 = vpop.permute.xlu0 %911
    %913 = vrot.lane.b32.xlu0 %v123, 1
    %v914 = vpop.permute.xlu0 %913
    %915 = vrot.lane.b32.xlu0 %v124, 1
    %v916 = vpop.permute.xlu0 %915
    %917 = vrot.lane.b32.xlu0 %v125, 1
    %v918 = vpop.permute.xlu0 %917
    %919 = vrot.lane.b32.xlu0 %v126, 1
    %v920 = vpop.permute.xlu0 %919
    %921 = vrot.lane.b32.xlu0 %v127, 1
    %v922 = vpop.permute.xlu0 %921
    %923 = vrot.lane.b32.xlu0 %v128, 1
    %v924 = vpop.permute.xlu0 %923
    %925 = vrot.lane.b32.xlu0 %v129, 1
    %v926 = vpop.permute.xlu0 %925
    %927 = vrot.lane.b32.xlu0 %v130, 1
    %v928 = vpop.permute.xlu0 %927
    %929 = vrot.lane.b32.xlu0 %v131, 1
    %v930 = vpop.permute.xlu0 %929
    %931 = vrot.lane.b32.xlu0 %v132, 1
    %v932 = vpop.permute.xlu0 %931
    %933 = vrot.lane.b32.xlu0 %v133, 1
    %v934 = vpop.permute.xlu0 %933
    %935 = vrot.lane.b32.xlu0 %v134, 1
    %v936 = vpop.permute.xlu0 %935
    %937 = vrot.lane.b32.xlu0 %v135, 1
    %v938 = vpop.permute.xlu0 %937
    %939 = vrot.lane.b32.xlu0 %v136, 1
    %v940 = vpop.permute.xlu0 %939
    %941 = vrot.lane.b32.xlu0 %v137, 1
    %v942 = vpop.permute.xlu0 %941
    %943 = vrot.lane.b32.xlu0 %v138, 1
    %v944 = vpop.permute.xlu0 %943
    %945 = vrot.lane.b32.xlu0 %v139, 1
    %v946 = vpop.permute.xlu0 %945
    %947 = vrot.lane.b32.xlu0 %v140, 1
    %v948 = vpop.permute.xlu0 %947
    %949 = vrot.lane.b32.xlu0 %v141, 1
    %v950 = vpop.permute.xlu0 %949
    %951 = vrot.lane.b32.xlu0 %v142, 1
    %v952 = vpop.permute.xlu0 %951
    %953 = vrot.lane.b32.xlu0 %v143, 1
    %v954 = vpop.permute.xlu0 %953
    %955 = vrot.lane.b32.xlu0 %v144, 1
    %v956 = vpop.permute.xlu0 %955
    %957 = vrot.lane.b32.xlu0 %v145, 1
    %v958 = vpop.permute.xlu0 %957
    %959 = vrot.lane.b32.xlu0 %v146, 1
    %v960 = vpop.permute.xlu0 %959
    %961 = vrot.lane.b32.xlu0 %v147, 1
    %v962 = vpop.permute.xlu0 %961
    %963 = vrot.lane.b32.xlu0 %v148, 1
    %v964 = vpop.permute.xlu0 %963
    %965 = vrot.lane.b32.xlu0 %v149, 1
    %v966 = vpop.permute.xlu0 %965
    %967 = vrot.lane.b32.xlu0 %v150, 1
    %v968 = vpop.permute.xlu0 %967
    %969 = vrot.lane.b32.xlu0 %v151, 1
    %v970 = vpop.permute.xlu0 %969
    %971 = vrot.lane.b32.xlu0 %v152, 1
    %v972 = vpop.permute.xlu0 %971
    %973 = vrot.lane.b32.xlu0 %v153, 1
    %v974 = vpop.permute.xlu0 %973
    %975 = vrot.lane.b32.xlu0 %v154, 1
    %v976 = vpop.permute.xlu0 %975
    %977 = vrot.lane.b32.xlu0 %v155, 1
    %v978 = vpop.permute.xlu0 %977
    %979 = vrot.lane.b32.xlu0 %v156, 1
    %v980 = vpop.permute.xlu0 %979
    %981 = vrot.lane.b32.xlu0 %v157, 1
    %v982 = vpop.permute.xlu0 %981
    %983 = vrot.lane.b32.xlu0 %v158, 1
    %v984 = vpop.permute.xlu0 %983
    %985 = vrot.lane.b32.xlu0 %v159, 1
    %v986 = vpop.permute.xlu0 %985
    %987 = vrot.lane.b32.xlu0 %v160, 1
    %v988 = vpop.permute.xlu0 %987
    %989 = vrot.lane.b32.xlu0 %v161, 1
    %v990 = vpop.permute.xlu0 %989
    %991 = vrot.lane.b32.xlu0 %v162, 1
    %v992 = vpop.permute.xlu0 %991
    %993 = vrot.lane.b32.xlu0 %v163, 1
    %v994 = vpop.permute.xlu0 %993
    %995 = vrot.lane.b32.xlu0 %v164, 1
    %v996 = vpop.permute.xlu0 %995
    %997 = vrot.lane.b32.xlu0 %v165, 1
    %v998 = vpop.permute.xlu0 %997
    %999 = vrot.lane.b32.xlu0 %v166, 1
    %v1000 = vpop.permute.xlu0 %999
    %1001 = vrot.lane.b32.xlu0 %v167, 1
    %v1002 = vpop.permute.xlu0 %1001
    %1003 = vrot.lane.b32.xlu0 %v168, 1
    %v1004 = vpop.permute.xlu0 %1003
    %1005 = vrot.lane.b32.xlu0 %v169, 1
    %v1006 = vpop.permute.xlu0 %1005
    %1007 = vrot.lane.b32.xlu0 %v170, 1
    %v1008 = vpop.permute.xlu0 %1007
    %1009 = vrot.lane.b32.xlu0 %v171, 1
    %v1010 = vpop.permute.xlu0 %1009
    %1011 = vrot.lane.b32.xlu0 %v172, 1
    %v1012 = vpop.permute.xlu0 %1011
    %1013 = vrot.lane.b32.xlu0 %v173, 1
    %v1014 = vpop.permute.xlu0 %1013
    %1015 = vrot.lane.b32.xlu0 %v174, 1
    %v1016 = vpop.permute.xlu0 %1015
    %1017 = vrot.lane.b32.xlu0 %v175, 1
    %v1018 = vpop.permute.xlu0 %1017
    %1019 = vrot.lane.b32.xlu0 %v176, 1
    %v1020 = vpop.permute.xlu0 %1019
    %1021 = vrot.lane.b32.xlu0 %v177, 1
    %v1022 = vpop.permute.xlu0 %1021
    %1023 = vrot.lane.b32.xlu0 %v178, 1
    %v1024 = vpop.permute.xlu0 %1023
    %1025 = vrot.lane.b32.xlu0 %v179, 1
    %v1026 = vpop.permute.xlu0 %1025
    %1027 = vrot.lane.b32.xlu0 %v180, 1
    %v1028 = vpop.permute.xlu0 %1027
    %1029 = vrot.lane.b32.xlu0 %v181, 1
    %v1030 = vpop.permute.xlu0 %1029
    %1031 = vrot.lane.b32.xlu0 %v182, 1
    %v1032 = vpop.permute.xlu0 %1031
    %1033 = vrot.lane.b32.xlu0 %v183, 1
    %v1034 = vpop.permute.xlu0 %1033
    %1035 = vrot.lane.b32.xlu0 %v184, 1
    %v1036 = vpop.permute.xlu0 %1035
    %vm1037 = vcmp.ge.s32.totalorder %v203, 1
    %v1038 = vsel %vm1037, -10.0, 0.0
    %v1039 = vmul.f32 %v718, %v1038
    %v1040 = vmul.f32 %v720, %v1038
    %v1041 = vmul.f32 %v722, %v1038
    %v1042 = vmul.f32 %v724, %v1038
    %v1043 = vmul.f32 %v726, %v1038
    %v1044 = vmul.f32 %v728, %v1038
    %v1045 = vmul.f32 %v730, %v1038
    %v1046 = vmul.f32 %v732, %v1038
    %v1047 = vmul.f32 %v734, %v1038
    %v1048 = vmul.f32 %v736, %v1038
    %v1049 = vmul.f32 %v738, %v1038
    %v1050 = vmul.f32 %v740, %v1038
    %v1051 = vmul.f32 %v742, %v1038
    %v1052 = vmul.f32 %v744, %v1038
    %v1053 = vmul.f32 %v746, %v1038
    %v1054 = vmul.f32 %v748, %v1038
    %v1055 = vmul.f32 %v750, %v1038
    %v1056 = vmul.f32 %v752, %v1038
    %v1057 = vmul.f32 %v754, %v1038
    %v1058 = vmul.f32 %v756, %v1038
    %v1059 = vmul.f32 %v758, %v1038
    %v1060 = vmul.f32 %v760, %v1038
    %v1061 = vmul.f32 %v762, %v1038
    %v1062 = vmul.f32 %v764, %v1038
    %v1063 = vmul.f32 %v766, %v1038
    %v1064 = vmul.f32 %v768, %v1038
    %v1065 = vmul.f32 %v770, %v1038
    %v1066 = vmul.f32 %v772, %v1038
    %v1067 = vmul.f32 %v774, %v1038
    %v1068 = vmul.f32 %v776, %v1038
    %v1069 = vmul.f32 %v778, %v1038
    %v1070 = vmul.f32 %v780, %v1038
    %v1071 = vmul.f32 %v782, %v1038
    %v1072 = vmul.f32 %v784, %v1038
    %v1073 = vmul.f32 %v786, %v1038
    %v1074 = vmul.f32 %v788, %v1038
    %v1075 = vmul.f32 %v790, %v1038
    %v1076 = vmul.f32 %v792, %v1038
    %v1077 = vmul.f32 %v794, %v1038
    %v1078 = vmul.f32 %v796, %v1038
    %v1079 = vmul.f32 %v798, %v1038
    %v1080 = vmul.f32 %v800, %v1038
    %v1081 = vmul.f32 %v802, %v1038
    %v1082 = vmul.f32 %v804, %v1038
    %v1083 = vmul.f32 %v806, %v1038
    %v1084 = vmul.f32 %v808, %v1038
    %v1085 = vmul.f32 %v810, %v1038
    %v1086 = vmul.f32 %v812, %v1038
    %v1087 = vmul.f32 %v814, %v1038
    %v1088 = vmul.f32 %v816, %v1038
    %v1089 = vmul.f32 %v818, %v1038
    %v1090 = vmul.f32 %v820, %v1038
    %v1091 = vmul.f32 %v822, %v1038
    %v1092 = vmul.f32 %v824, %v1038
    %v1093 = vmul.f32 %v826, %v1038
    %v1094 = vmul.f32 %v828, %v1038
    %v1095 = vmul.f32 %v830, %v1038
    %v1096 = vmul.f32 %v832, %v1038
    %v1097 = vmul.f32 %v834, %v1038
    %v1098 = vmul.f32 %v836, %v1038
    %v1099 = vmul.f32 %v838, %v1038
    %v1100 = vmul.f32 %v840, %v1038
    %v1101 = vmul.f32 %v842, %v1038
    %v1102 = vmul.f32 %v844, %v1038
    %v1103 = vmul.f32 %v846, %v1038
    %v1104 = vmul.f32 %v848, %v1038
    %v1105 = vmul.f32 %v850, %v1038
    %v1106 = vmul.f32 %v852, %v1038
    %v1107 = vmul.f32 %v854, %v1038
    %v1108 = vmul.f32 %v856, %v1038
    %v1109 = vmul.f32 %v858, %v1038
    %v1110 = vmul.f32 %v860, %v1038
    %v1111 = vmul.f32 %v862, %v1038
    %v1112 = vmul.f32 %v864, %v1038
    %v1113 = vmul.f32 %v866, %v1038
    %v1114 = vmul.f32 %v868, %v1038
    %v1115 = vmul.f32 %v870, %v1038
    %v1116 = vmul.f32 %v872, %v1038
    %v1117 = vmul.f32 %v874, %v1038
    %v1118 = vmul.f32 %v876, %v1038
    %v1119 = vmul.f32 %v878, %v1038
    %v1120 = vmul.f32 %v880, %v1038
    %v1121 = vmul.f32 %v882, %v1038
    %v1122 = vmul.f32 %v884, %v1038
    %v1123 = vmul.f32 %v886, %v1038
    %v1124 = vmul.f32 %v888, %v1038
    %v1125 = vmul.f32 %v890, %v1038
    %v1126 = vmul.f32 %v892, %v1038
    %v1127 = vmul.f32 %v894, %v1038
    %v1128 = vmul.f32 %v896, %v1038
    %v1129 = vmul.f32 %v898, %v1038
    %v1130 = vmul.f32 %v900, %v1038
    %v1131 = vmul.f32 %v902, %v1038
    %v1132 = vmul.f32 %v904, %v1038
    %v1133 = vmul.f32 %v906, %v1038
    %v1134 = vmul.f32 %v908, %v1038
    %v1135 = vmul.f32 %v910, %v1038
    %v1136 = vmul.f32 %v912, %v1038
    %v1137 = vmul.f32 %v914, %v1038
    %v1138 = vmul.f32 %v916, %v1038
    %v1139 = vmul.f32 %v918, %v1038
    %v1140 = vmul.f32 %v920, %v1038
    %v1141 = vmul.f32 %v922, %v1038
    %v1142 = vmul.f32 %v924, %v1038
    %v1143 = vmul.f32 %v926, %v1038
    %v1144 = vmul.f32 %v928, %v1038
    %v1145 = vmul.f32 %v930, %v1038
    %v1146 = vmul.f32 %v932, %v1038
    %v1147 = vmul.f32 %v934, %v1038
    %v1148 = vmul.f32 %v936, %v1038
    %v1149 = vmul.f32 %v938, %v1038
    %v1150 = vmul.f32 %v940, %v1038
    %v1151 = vmul.f32 %v942, %v1038
    %v1152 = vmul.f32 %v944, %v1038
    %v1153 = vmul.f32 %v946, %v1038
    %v1154 = vmul.f32 %v948, %v1038
    %v1155 = vmul.f32 %v950, %v1038
    %v1156 = vmul.f32 %v952, %v1038
    %v1157 = vmul.f32 %v954, %v1038
    %v1158 = vmul.f32 %v956, %v1038
    %v1159 = vmul.f32 %v958, %v1038
    %v1160 = vmul.f32 %v960, %v1038
    %v1161 = vmul.f32 %v962, %v1038
    %v1162 = vmul.f32 %v964, %v1038
    %v1163 = vmul.f32 %v966, %v1038
    %v1164 = vmul.f32 %v968, %v1038
    %v1165 = vmul.f32 %v970, %v1038
    %v1166 = vmul.f32 %v972, %v1038
    %v1167 = vmul.f32 %v974, %v1038
    %v1168 = vmul.f32 %v976, %v1038
    %v1169 = vmul.f32 %v978, %v1038
    %v1170 = vmul.f32 %v980, %v1038
    %v1171 = vmul.f32 %v982, %v1038
    %v1172 = vmul.f32 %v984, %v1038
    %v1173 = vmul.f32 %v986, %v1038
    %v1174 = vmul.f32 %v988, %v1038
    %v1175 = vmul.f32 %v990, %v1038
    %v1176 = vmul.f32 %v992, %v1038
    %v1177 = vmul.f32 %v994, %v1038
    %v1178 = vmul.f32 %v996, %v1038
    %v1179 = vmul.f32 %v998, %v1038
    %v1180 = vmul.f32 %v1000, %v1038
    %v1181 = vmul.f32 %v1002, %v1038
    %v1182 = vmul.f32 %v1004, %v1038
    %v1183 = vmul.f32 %v1006, %v1038
    %v1184 = vmul.f32 %v1008, %v1038
    %v1185 = vmul.f32 %v1010, %v1038
    %v1186 = vmul.f32 %v1012, %v1038
    %v1187 = vmul.f32 %v1014, %v1038
    %v1188 = vmul.f32 %v1016, %v1038
    %v1189 = vmul.f32 %v1018, %v1038
    %v1190 = vmul.f32 %v1020, %v1038
    %v1191 = vmul.f32 %v1022, %v1038
    %v1192 = vmul.f32 %v1024, %v1038
    %v1193 = vmul.f32 %v1026, %v1038
    %v1194 = vmul.f32 %v1028, %v1038
    %v1195 = vmul.f32 %v1030, %v1038
    %v1196 = vmul.f32 %v1032, %v1038
    %v1197 = vmul.f32 %v1034, %v1038
    %v1198 = vmul.f32 %v1036, %v1038
    %v1199 = vadd.f32 %v557, %v1039
    %v1200 = vadd.f32 %v558, %v1040
    %v1201 = vadd.f32 %v559, %v1041
    %v1202 = vadd.f32 %v560, %v1042
    %v1203 = vadd.f32 %v561, %v1043
    %v1204 = vadd.f32 %v562, %v1044
    %v1205 = vadd.f32 %v563, %v1045
    %v1206 = vadd.f32 %v564, %v1046
    %v1207 = vadd.f32 %v565, %v1047
    %v1208 = vadd.f32 %v566, %v1048
    %v1209 = vadd.f32 %v567, %v1049
    %v1210 = vadd.f32 %v568, %v1050
    %v1211 = vadd.f32 %v569, %v1051
    %v1212 = vadd.f32 %v570, %v1052
    %v1213 = vadd.f32 %v571, %v1053
    %v1214 = vadd.f32 %v572, %v1054
    %v1215 = vadd.f32 %v573, %v1055
    %v1216 = vadd.f32 %v574, %v1056
    %v1217 = vadd.f32 %v575, %v1057
    %v1218 = vadd.f32 %v576, %v1058
    %v1219 = vadd.f32 %v577, %v1059
    %v1220 = vadd.f32 %v578, %v1060
    %v1221 = vadd.f32 %v579, %v1061
    %v1222 = vadd.f32 %v580, %v1062
    %v1223 = vadd.f32 %v581, %v1063
    %v1224 = vadd.f32 %v582, %v1064
    %v1225 = vadd.f32 %v583, %v1065
    %v1226 = vadd.f32 %v584, %v1066
    %v1227 = vadd.f32 %v585, %v1067
    %v1228 = vadd.f32 %v586, %v1068
    %v1229 = vadd.f32 %v587, %v1069
    %v1230 = vadd.f32 %v588, %v1070
    %v1231 = vadd.f32 %v589, %v1071
    %v1232 = vadd.f32 %v590, %v1072
    %v1233 = vadd.f32 %v591, %v1073
    %v1234 = vadd.f32 %v592, %v1074
    %v1235 = vadd.f32 %v593, %v1075
    %v1236 = vadd.f32 %v594, %v1076
    %v1237 = vadd.f32 %v595, %v1077
    %v1238 = vadd.f32 %v596, %v1078
    %v1239 = vadd.f32 %v597, %v1079
    %v1240 = vadd.f32 %v598, %v1080
    %v1241 = vadd.f32 %v599, %v1081
    %v1242 = vadd.f32 %v600, %v1082
    %v1243 = vadd.f32 %v601, %v1083
    %v1244 = vadd.f32 %v602, %v1084
    %v1245 = vadd.f32 %v603, %v1085
    %v1246 = vadd.f32 %v604, %v1086
    %v1247 = vadd.f32 %v605, %v1087
    %v1248 = vadd.f32 %v606, %v1088
    %v1249 = vadd.f32 %v607, %v1089
    %v1250 = vadd.f32 %v608, %v1090
    %v1251 = vadd.f32 %v609, %v1091
    %v1252 = vadd.f32 %v610, %v1092
    %v1253 = vadd.f32 %v611, %v1093
    %v1254 = vadd.f32 %v612, %v1094
    %v1255 = vadd.f32 %v613, %v1095
    %v1256 = vadd.f32 %v614, %v1096
    %v1257 = vadd.f32 %v615, %v1097
    %v1258 = vadd.f32 %v616, %v1098
    %v1259 = vadd.f32 %v617, %v1099
    %v1260 = vadd.f32 %v618, %v1100
    %v1261 = vadd.f32 %v619, %v1101
    %v1262 = vadd.f32 %v620, %v1102
    %v1263 = vadd.f32 %v621, %v1103
    %v1264 = vadd.f32 %v622, %v1104
    %v1265 = vadd.f32 %v623, %v1105
    %v1266 = vadd.f32 %v624, %v1106
    %v1267 = vadd.f32 %v625, %v1107
    %v1268 = vadd.f32 %v626, %v1108
    %v1269 = vadd.f32 %v627, %v1109
    %v1270 = vadd.f32 %v628, %v1110
    %v1271 = vadd.f32 %v629, %v1111
    %v1272 = vadd.f32 %v630, %v1112
    %v1273 = vadd.f32 %v631, %v1113
    %v1274 = vadd.f32 %v632, %v1114
    %v1275 = vadd.f32 %v633, %v1115
    %v1276 = vadd.f32 %v634, %v1116
    %v1277 = vadd.f32 %v635, %v1117
    %v1278 = vadd.f32 %v636, %v1118
    %v1279 = vadd.f32 %v637, %v1119
    %v1280 = vadd.f32 %v638, %v1120
    %v1281 = vadd.f32 %v639, %v1121
    %v1282 = vadd.f32 %v640, %v1122
    %v1283 = vadd.f32 %v641, %v1123
    %v1284 = vadd.f32 %v642, %v1124
    %v1285 = vadd.f32 %v643, %v1125
    %v1286 = vadd.f32 %v644, %v1126
    %v1287 = vadd.f32 %v645, %v1127
    %v1288 = vadd.f32 %v646, %v1128
    %v1289 = vadd.f32 %v647, %v1129
    %v1290 = vadd.f32 %v648, %v1130
    %v1291 = vadd.f32 %v649, %v1131
    %v1292 = vadd.f32 %v650, %v1132
    %v1293 = vadd.f32 %v651, %v1133
    %v1294 = vadd.f32 %v652, %v1134
    %v1295 = vadd.f32 %v653, %v1135
    %v1296 = vadd.f32 %v654, %v1136
    %v1297 = vadd.f32 %v655, %v1137
    %v1298 = vadd.f32 %v656, %v1138
    %v1299 = vadd.f32 %v657, %v1139
    %v1300 = vadd.f32 %v658, %v1140
    %v1301 = vadd.f32 %v659, %v1141
    %v1302 = vadd.f32 %v660, %v1142
    %v1303 = vadd.f32 %v661, %v1143
    %v1304 = vadd.f32 %v662, %v1144
    %v1305 = vadd.f32 %v663, %v1145
    %v1306 = vadd.f32 %v664, %v1146
    %v1307 = vadd.f32 %v665, %v1147
    %v1308 = vadd.f32 %v666, %v1148
    %v1309 = vadd.f32 %v667, %v1149
    %v1310 = vadd.f32 %v668, %v1150
    %v1311 = vadd.f32 %v669, %v1151
    %v1312 = vadd.f32 %v670, %v1152
    %v1313 = vadd.f32 %v671, %v1153
    %v1314 = vadd.f32 %v672, %v1154
    %v1315 = vadd.f32 %v673, %v1155
    %v1316 = vadd.f32 %v674, %v1156
    %v1317 = vadd.f32 %v675, %v1157
    %v1318 = vadd.f32 %v676, %v1158
    %v1319 = vadd.f32 %v677, %v1159
    %v1320 = vadd.f32 %v678, %v1160
    %v1321 = vadd.f32 %v679, %v1161
    %v1322 = vadd.f32 %v680, %v1162
    %v1323 = vadd.f32 %v681, %v1163
    %v1324 = vadd.f32 %v682, %v1164
    %v1325 = vadd.f32 %v683, %v1165
    %v1326 = vadd.f32 %v684, %v1166
    %v1327 = vadd.f32 %v685, %v1167
    %v1328 = vadd.f32 %v686, %v1168
    %v1329 = vadd.f32 %v687, %v1169
    %v1330 = vadd.f32 %v688, %v1170
    %v1331 = vadd.f32 %v689, %v1171
    %v1332 = vadd.f32 %v690, %v1172
    %v1333 = vadd.f32 %v691, %v1173
    %v1334 = vadd.f32 %v692, %v1174
    %v1335 = vadd.f32 %v693, %v1175
    %v1336 = vadd.f32 %v694, %v1176
    %v1337 = vadd.f32 %v695, %v1177
    %v1338 = vadd.f32 %v696, %v1178
    %v1339 = vadd.f32 %v697, %v1179
    %v1340 = vadd.f32 %v698, %v1180
    %v1341 = vadd.f32 %v699, %v1181
    %v1342 = vadd.f32 %v700, %v1182
    %v1343 = vadd.f32 %v701, %v1183
    %v1344 = vadd.f32 %v702, %v1184
    %v1345 = vadd.f32 %v703, %v1185
    %v1346 = vadd.f32 %v704, %v1186
    %v1347 = vadd.f32 %v705, %v1187
    %v1348 = vadd.f32 %v706, %v1188
    %v1349 = vadd.f32 %v707, %v1189
    %v1350 = vadd.f32 %v708, %v1190
    %v1351 = vadd.f32 %v709, %v1191
    %v1352 = vadd.f32 %v710, %v1192
    %v1353 = vadd.f32 %v711, %v1193
    %v1354 = vadd.f32 %v712, %v1194
    %v1355 = vadd.f32 %v713, %v1195
    %v1356 = vadd.f32 %v714, %v1196
    %v1357 = vadd.f32 %v715, %v1197
    %v1358 = vadd.f32 %v716, %v1198
    %1359 = vrot.lane.b32.xlu0 %v25, 127
    %v1360 = vpop.permute.xlu0 %1359
    %1361 = vrot.lane.b32.xlu0 %v26, 127
    %v1362 = vpop.permute.xlu0 %1361
    %1363 = vrot.lane.b32.xlu0 %v27, 127
    %v1364 = vpop.permute.xlu0 %1363
    %1365 = vrot.lane.b32.xlu0 %v28, 127
    %v1366 = vpop.permute.xlu0 %1365
    %1367 = vrot.lane.b32.xlu0 %v29, 127
    %v1368 = vpop.permute.xlu0 %1367
    %1369 = vrot.lane.b32.xlu0 %v30, 127
    %v1370 = vpop.permute.xlu0 %1369
    %1371 = vrot.lane.b32.xlu0 %v31, 127
    %v1372 = vpop.permute.xlu0 %1371
    %1373 = vrot.lane.b32.xlu0 %v32, 127
    %v1374 = vpop.permute.xlu0 %1373
    %1375 = vrot.lane.b32.xlu0 %v33, 127
    %v1376 = vpop.permute.xlu0 %1375
    %1377 = vrot.lane.b32.xlu0 %v34, 127
    %v1378 = vpop.permute.xlu0 %1377
    %1379 = vrot.lane.b32.xlu0 %v35, 127
    %v1380 = vpop.permute.xlu0 %1379
    %1381 = vrot.lane.b32.xlu0 %v36, 127
    %v1382 = vpop.permute.xlu0 %1381
    %1383 = vrot.lane.b32.xlu0 %v37, 127
    %v1384 = vpop.permute.xlu0 %1383
    %1385 = vrot.lane.b32.xlu0 %v38, 127
    %v1386 = vpop.permute.xlu0 %1385
    %1387 = vrot.lane.b32.xlu0 %v39, 127
    %v1388 = vpop.permute.xlu0 %1387
    %1389 = vrot.lane.b32.xlu0 %v40, 127
    %v1390 = vpop.permute.xlu0 %1389
    %1391 = vrot.lane.b32.xlu0 %v41, 127
    %v1392 = vpop.permute.xlu0 %1391
    %1393 = vrot.lane.b32.xlu0 %v42, 127
    %v1394 = vpop.permute.xlu0 %1393
    %1395 = vrot.lane.b32.xlu0 %v43, 127
    %v1396 = vpop.permute.xlu0 %1395
    %1397 = vrot.lane.b32.xlu0 %v44, 127
    %v1398 = vpop.permute.xlu0 %1397
    %1399 = vrot.lane.b32.xlu0 %v45, 127
    %v1400 = vpop.permute.xlu0 %1399
    %1401 = vrot.lane.b32.xlu0 %v46, 127
    %v1402 = vpop.permute.xlu0 %1401
    %1403 = vrot.lane.b32.xlu0 %v47, 127
    %v1404 = vpop.permute.xlu0 %1403
    %1405 = vrot.lane.b32.xlu0 %v48, 127
    %v1406 = vpop.permute.xlu0 %1405
    %1407 = vrot.lane.b32.xlu0 %v49, 127
    %v1408 = vpop.permute.xlu0 %1407
    %1409 = vrot.lane.b32.xlu0 %v50, 127
    %v1410 = vpop.permute.xlu0 %1409
    %1411 = vrot.lane.b32.xlu0 %v51, 127
    %v1412 = vpop.permute.xlu0 %1411
    %1413 = vrot.lane.b32.xlu0 %v52, 127
    %v1414 = vpop.permute.xlu0 %1413
    %1415 = vrot.lane.b32.xlu0 %v53, 127
    %v1416 = vpop.permute.xlu0 %1415
    %1417 = vrot.lane.b32.xlu0 %v54, 127
    %v1418 = vpop.permute.xlu0 %1417
    %1419 = vrot.lane.b32.xlu0 %v55, 127
    %v1420 = vpop.permute.xlu0 %1419
    %1421 = vrot.lane.b32.xlu0 %v56, 127
    %v1422 = vpop.permute.xlu0 %1421
    %1423 = vrot.lane.b32.xlu0 %v57, 127
    %v1424 = vpop.permute.xlu0 %1423
    %1425 = vrot.lane.b32.xlu0 %v58, 127
    %v1426 = vpop.permute.xlu0 %1425
    %1427 = vrot.lane.b32.xlu0 %v59, 127
    %v1428 = vpop.permute.xlu0 %1427
    %1429 = vrot.lane.b32.xlu0 %v60, 127
    %v1430 = vpop.permute.xlu0 %1429
    %1431 = vrot.lane.b32.xlu0 %v61, 127
    %v1432 = vpop.permute.xlu0 %1431
    %1433 = vrot.lane.b32.xlu0 %v62, 127
    %v1434 = vpop.permute.xlu0 %1433
    %1435 = vrot.lane.b32.xlu0 %v63, 127
    %v1436 = vpop.permute.xlu0 %1435
    %1437 = vrot.lane.b32.xlu0 %v64, 127
    %v1438 = vpop.permute.xlu0 %1437
    %1439 = vrot.lane.b32.xlu0 %v65, 127
    %v1440 = vpop.permute.xlu0 %1439
    %1441 = vrot.lane.b32.xlu0 %v66, 127
    %v1442 = vpop.permute.xlu0 %1441
    %1443 = vrot.lane.b32.xlu0 %v67, 127
    %v1444 = vpop.permute.xlu0 %1443
    %1445 = vrot.lane.b32.xlu0 %v68, 127
    %v1446 = vpop.permute.xlu0 %1445
    %1447 = vrot.lane.b32.xlu0 %v69, 127
    %v1448 = vpop.permute.xlu0 %1447
    %1449 = vrot.lane.b32.xlu0 %v70, 127
    %v1450 = vpop.permute.xlu0 %1449
    %1451 = vrot.lane.b32.xlu0 %v71, 127
    %v1452 = vpop.permute.xlu0 %1451
    %1453 = vrot.lane.b32.xlu0 %v72, 127
    %v1454 = vpop.permute.xlu0 %1453
    %1455 = vrot.lane.b32.xlu0 %v73, 127
    %v1456 = vpop.permute.xlu0 %1455
    %1457 = vrot.lane.b32.xlu0 %v74, 127
    %v1458 = vpop.permute.xlu0 %1457
    %1459 = vrot.lane.b32.xlu0 %v75, 127
    %v1460 = vpop.permute.xlu0 %1459
    %1461 = vrot.lane.b32.xlu0 %v76, 127
    %v1462 = vpop.permute.xlu0 %1461
    %1463 = vrot.lane.b32.xlu0 %v77, 127
    %v1464 = vpop.permute.xlu0 %1463
    %1465 = vrot.lane.b32.xlu0 %v78, 127
    %v1466 = vpop.permute.xlu0 %1465
    %1467 = vrot.lane.b32.xlu0 %v79, 127
    %v1468 = vpop.permute.xlu0 %1467
    %1469 = vrot.lane.b32.xlu0 %v80, 127
    %v1470 = vpop.permute.xlu0 %1469
    %1471 = vrot.lane.b32.xlu0 %v81, 127
    %v1472 = vpop.permute.xlu0 %1471
    %1473 = vrot.lane.b32.xlu0 %v82, 127
    %v1474 = vpop.permute.xlu0 %1473
    %1475 = vrot.lane.b32.xlu0 %v83, 127
    %v1476 = vpop.permute.xlu0 %1475
    %1477 = vrot.lane.b32.xlu0 %v84, 127
    %v1478 = vpop.permute.xlu0 %1477
    %1479 = vrot.lane.b32.xlu0 %v85, 127
    %v1480 = vpop.permute.xlu0 %1479
    %1481 = vrot.lane.b32.xlu0 %v86, 127
    %v1482 = vpop.permute.xlu0 %1481
    %1483 = vrot.lane.b32.xlu0 %v87, 127
    %v1484 = vpop.permute.xlu0 %1483
    %1485 = vrot.lane.b32.xlu0 %v88, 127
    %v1486 = vpop.permute.xlu0 %1485
    %1487 = vrot.lane.b32.xlu0 %v89, 127
    %v1488 = vpop.permute.xlu0 %1487
    %1489 = vrot.lane.b32.xlu0 %v90, 127
    %v1490 = vpop.permute.xlu0 %1489
    %1491 = vrot.lane.b32.xlu0 %v91, 127
    %v1492 = vpop.permute.xlu0 %1491
    %1493 = vrot.lane.b32.xlu0 %v92, 127
    %v1494 = vpop.permute.xlu0 %1493
    %1495 = vrot.lane.b32.xlu0 %v93, 127
    %v1496 = vpop.permute.xlu0 %1495
    %1497 = vrot.lane.b32.xlu0 %v94, 127
    %v1498 = vpop.permute.xlu0 %1497
    %1499 = vrot.lane.b32.xlu0 %v95, 127
    %v1500 = vpop.permute.xlu0 %1499
    %1501 = vrot.lane.b32.xlu0 %v96, 127
    %v1502 = vpop.permute.xlu0 %1501
    %1503 = vrot.lane.b32.xlu0 %v97, 127
    %v1504 = vpop.permute.xlu0 %1503
    %1505 = vrot.lane.b32.xlu0 %v98, 127
    %v1506 = vpop.permute.xlu0 %1505
    %1507 = vrot.lane.b32.xlu0 %v99, 127
    %v1508 = vpop.permute.xlu0 %1507
    %1509 = vrot.lane.b32.xlu0 %v100, 127
    %v1510 = vpop.permute.xlu0 %1509
    %1511 = vrot.lane.b32.xlu0 %v101, 127
    %v1512 = vpop.permute.xlu0 %1511
    %1513 = vrot.lane.b32.xlu0 %v102, 127
    %v1514 = vpop.permute.xlu0 %1513
    %1515 = vrot.lane.b32.xlu0 %v103, 127
    %v1516 = vpop.permute.xlu0 %1515
    %1517 = vrot.lane.b32.xlu0 %v104, 127
    %v1518 = vpop.permute.xlu0 %1517
    %1519 = vrot.lane.b32.xlu0 %v105, 127
    %v1520 = vpop.permute.xlu0 %1519
    %1521 = vrot.lane.b32.xlu0 %v106, 127
    %v1522 = vpop.permute.xlu0 %1521
    %1523 = vrot.lane.b32.xlu0 %v107, 127
    %v1524 = vpop.permute.xlu0 %1523
    %1525 = vrot.lane.b32.xlu0 %v108, 127
    %v1526 = vpop.permute.xlu0 %1525
    %1527 = vrot.lane.b32.xlu0 %v109, 127
    %v1528 = vpop.permute.xlu0 %1527
    %1529 = vrot.lane.b32.xlu0 %v110, 127
    %v1530 = vpop.permute.xlu0 %1529
    %1531 = vrot.lane.b32.xlu0 %v111, 127
    %v1532 = vpop.permute.xlu0 %1531
    %1533 = vrot.lane.b32.xlu0 %v112, 127
    %v1534 = vpop.permute.xlu0 %1533
    %1535 = vrot.lane.b32.xlu0 %v113, 127
    %v1536 = vpop.permute.xlu0 %1535
    %1537 = vrot.lane.b32.xlu0 %v114, 127
    %v1538 = vpop.permute.xlu0 %1537
    %1539 = vrot.lane.b32.xlu0 %v115, 127
    %v1540 = vpop.permute.xlu0 %1539
    %1541 = vrot.lane.b32.xlu0 %v116, 127
    %v1542 = vpop.permute.xlu0 %1541
    %1543 = vrot.lane.b32.xlu0 %v117, 127
    %v1544 = vpop.permute.xlu0 %1543
    %1545 = vrot.lane.b32.xlu0 %v118, 127
    %v1546 = vpop.permute.xlu0 %1545
    %1547 = vrot.lane.b32.xlu0 %v119, 127
    %v1548 = vpop.permute.xlu0 %1547
    %1549 = vrot.lane.b32.xlu0 %v120, 127
    %v1550 = vpop.permute.xlu0 %1549
    %1551 = vrot.lane.b32.xlu0 %v121, 127
    %v1552 = vpop.permute.xlu0 %1551
    %1553 = vrot.lane.b32.xlu0 %v122, 127
    %v1554 = vpop.permute.xlu0 %1553
    %1555 = vrot.lane.b32.xlu0 %v123, 127
    %v1556 = vpop.permute.xlu0 %1555
    %1557 = vrot.lane.b32.xlu0 %v124, 127
    %v1558 = vpop.permute.xlu0 %1557
    %1559 = vrot.lane.b32.xlu0 %v125, 127
    %v1560 = vpop.permute.xlu0 %1559
    %1561 = vrot.lane.b32.xlu0 %v126, 127
    %v1562 = vpop.permute.xlu0 %1561
    %1563 = vrot.lane.b32.xlu0 %v127, 127
    %v1564 = vpop.permute.xlu0 %1563
    %1565 = vrot.lane.b32.xlu0 %v128, 127
    %v1566 = vpop.permute.xlu0 %1565
    %1567 = vrot.lane.b32.xlu0 %v129, 127
    %v1568 = vpop.permute.xlu0 %1567
    %1569 = vrot.lane.b32.xlu0 %v130, 127
    %v1570 = vpop.permute.xlu0 %1569
    %1571 = vrot.lane.b32.xlu0 %v131, 127
    %v1572 = vpop.permute.xlu0 %1571
    %1573 = vrot.lane.b32.xlu0 %v132, 127
    %v1574 = vpop.permute.xlu0 %1573
    %1575 = vrot.lane.b32.xlu0 %v133, 127
    %v1576 = vpop.permute.xlu0 %1575
    %1577 = vrot.lane.b32.xlu0 %v134, 127
    %v1578 = vpop.permute.xlu0 %1577
    %1579 = vrot.lane.b32.xlu0 %v135, 127
    %v1580 = vpop.permute.xlu0 %1579
    %1581 = vrot.lane.b32.xlu0 %v136, 127
    %v1582 = vpop.permute.xlu0 %1581
    %1583 = vrot.lane.b32.xlu0 %v137, 127
    %v1584 = vpop.permute.xlu0 %1583
    %1585 = vrot.lane.b32.xlu0 %v138, 127
    %v1586 = vpop.permute.xlu0 %1585
    %1587 = vrot.lane.b32.xlu0 %v139, 127
    %v1588 = vpop.permute.xlu0 %1587
    %1589 = vrot.lane.b32.xlu0 %v140, 127
    %v1590 = vpop.permute.xlu0 %1589
    %1591 = vrot.lane.b32.xlu0 %v141, 127
    %v1592 = vpop.permute.xlu0 %1591
    %1593 = vrot.lane.b32.xlu0 %v142, 127
    %v1594 = vpop.permute.xlu0 %1593
    %1595 = vrot.lane.b32.xlu0 %v143, 127
    %v1596 = vpop.permute.xlu0 %1595
    %1597 = vrot.lane.b32.xlu0 %v144, 127
    %v1598 = vpop.permute.xlu0 %1597
    %1599 = vrot.lane.b32.xlu0 %v145, 127
    %v1600 = vpop.permute.xlu0 %1599
    %1601 = vrot.lane.b32.xlu0 %v146, 127
    %v1602 = vpop.permute.xlu0 %1601
    %1603 = vrot.lane.b32.xlu0 %v147, 127
    %v1604 = vpop.permute.xlu0 %1603
    %1605 = vrot.lane.b32.xlu0 %v148, 127
    %v1606 = vpop.permute.xlu0 %1605
    %1607 = vrot.lane.b32.xlu0 %v149, 127
    %v1608 = vpop.permute.xlu0 %1607
    %1609 = vrot.lane.b32.xlu0 %v150, 127
    %v1610 = vpop.permute.xlu0 %1609
    %1611 = vrot.lane.b32.xlu0 %v151, 127
    %v1612 = vpop.permute.xlu0 %1611
    %1613 = vrot.lane.b32.xlu0 %v152, 127
    %v1614 = vpop.permute.xlu0 %1613
    %1615 = vrot.lane.b32.xlu0 %v153, 127
    %v1616 = vpop.permute.xlu0 %1615
    %1617 = vrot.lane.b32.xlu0 %v154, 127
    %v1618 = vpop.permute.xlu0 %1617
    %1619 = vrot.lane.b32.xlu0 %v155, 127
    %v1620 = vpop.permute.xlu0 %1619
    %1621 = vrot.lane.b32.xlu0 %v156, 127
    %v1622 = vpop.permute.xlu0 %1621
    %1623 = vrot.lane.b32.xlu0 %v157, 127
    %v1624 = vpop.permute.xlu0 %1623
    %1625 = vrot.lane.b32.xlu0 %v158, 127
    %v1626 = vpop.permute.xlu0 %1625
    %1627 = vrot.lane.b32.xlu0 %v159, 127
    %v1628 = vpop.permute.xlu0 %1627
    %1629 = vrot.lane.b32.xlu0 %v160, 127
    %v1630 = vpop.permute.xlu0 %1629
    %1631 = vrot.lane.b32.xlu0 %v161, 127
    %v1632 = vpop.permute.xlu0 %1631
    %1633 = vrot.lane.b32.xlu0 %v162, 127
    %v1634 = vpop.permute.xlu0 %1633
    %1635 = vrot.lane.b32.xlu0 %v163, 127
    %v1636 = vpop.permute.xlu0 %1635
    %1637 = vrot.lane.b32.xlu0 %v164, 127
    %v1638 = vpop.permute.xlu0 %1637
    %1639 = vrot.lane.b32.xlu0 %v165, 127
    %v1640 = vpop.permute.xlu0 %1639
    %1641 = vrot.lane.b32.xlu0 %v166, 127
    %v1642 = vpop.permute.xlu0 %1641
    %1643 = vrot.lane.b32.xlu0 %v167, 127
    %v1644 = vpop.permute.xlu0 %1643
    %1645 = vrot.lane.b32.xlu0 %v168, 127
    %v1646 = vpop.permute.xlu0 %1645
    %1647 = vrot.lane.b32.xlu0 %v169, 127
    %v1648 = vpop.permute.xlu0 %1647
    %1649 = vrot.lane.b32.xlu0 %v170, 127
    %v1650 = vpop.permute.xlu0 %1649
    %1651 = vrot.lane.b32.xlu0 %v171, 127
    %v1652 = vpop.permute.xlu0 %1651
    %1653 = vrot.lane.b32.xlu0 %v172, 127
    %v1654 = vpop.permute.xlu0 %1653
    %1655 = vrot.lane.b32.xlu0 %v173, 127
    %v1656 = vpop.permute.xlu0 %1655
    %1657 = vrot.lane.b32.xlu0 %v174, 127
    %v1658 = vpop.permute.xlu0 %1657
    %1659 = vrot.lane.b32.xlu0 %v175, 127
    %v1660 = vpop.permute.xlu0 %1659
    %1661 = vrot.lane.b32.xlu0 %v176, 127
    %v1662 = vpop.permute.xlu0 %1661
    %1663 = vrot.lane.b32.xlu0 %v177, 127
    %v1664 = vpop.permute.xlu0 %1663
    %1665 = vrot.lane.b32.xlu0 %v178, 127
    %v1666 = vpop.permute.xlu0 %1665
    %1667 = vrot.lane.b32.xlu0 %v179, 127
    %v1668 = vpop.permute.xlu0 %1667
    %1669 = vrot.lane.b32.xlu0 %v180, 127
    %v1670 = vpop.permute.xlu0 %1669
    %1671 = vrot.lane.b32.xlu0 %v181, 127
    %v1672 = vpop.permute.xlu0 %1671
    %1673 = vrot.lane.b32.xlu0 %v182, 127
    %v1674 = vpop.permute.xlu0 %1673
    %1675 = vrot.lane.b32.xlu0 %v183, 127
    %v1676 = vpop.permute.xlu0 %1675
    %1677 = vrot.lane.b32.xlu0 %v184, 127
    %v1678 = vpop.permute.xlu0 %1677
    %vm1679 = vcmp.lt.s32.totalorder %v203, 127
    %v1680 = vsel %vm1679, 10.0, 0.0
    %v1681 = vmul.f32 %v1360, %v1680
    %v1682 = vmul.f32 %v1362, %v1680
    %v1683 = vmul.f32 %v1364, %v1680
    %v1684 = vmul.f32 %v1366, %v1680
    %v1685 = vmul.f32 %v1368, %v1680
    %v1686 = vmul.f32 %v1370, %v1680
    %v1687 = vmul.f32 %v1372, %v1680
    %v1688 = vmul.f32 %v1374, %v1680
    %v1689 = vmul.f32 %v1376, %v1680
    %v1690 = vmul.f32 %v1378, %v1680
    %v1691 = vmul.f32 %v1380, %v1680
    %v1692 = vmul.f32 %v1382, %v1680
    %v1693 = vmul.f32 %v1384, %v1680
    %v1694 = vmul.f32 %v1386, %v1680
    %v1695 = vmul.f32 %v1388, %v1680
    %v1696 = vmul.f32 %v1390, %v1680
    %v1697 = vmul.f32 %v1392, %v1680
    %v1698 = vmul.f32 %v1394, %v1680
    %v1699 = vmul.f32 %v1396, %v1680
    %v1700 = vmul.f32 %v1398, %v1680
    %v1701 = vmul.f32 %v1400, %v1680
    %v1702 = vmul.f32 %v1402, %v1680
    %v1703 = vmul.f32 %v1404, %v1680
    %v1704 = vmul.f32 %v1406, %v1680
    %v1705 = vmul.f32 %v1408, %v1680
    %v1706 = vmul.f32 %v1410, %v1680
    %v1707 = vmul.f32 %v1412, %v1680
    %v1708 = vmul.f32 %v1414, %v1680
    %v1709 = vmul.f32 %v1416, %v1680
    %v1710 = vmul.f32 %v1418, %v1680
    %v1711 = vmul.f32 %v1420, %v1680
    %v1712 = vmul.f32 %v1422, %v1680
    %v1713 = vmul.f32 %v1424, %v1680
    %v1714 = vmul.f32 %v1426, %v1680
    %v1715 = vmul.f32 %v1428, %v1680
    %v1716 = vmul.f32 %v1430, %v1680
    %v1717 = vmul.f32 %v1432, %v1680
    %v1718 = vmul.f32 %v1434, %v1680
    %v1719 = vmul.f32 %v1436, %v1680
    %v1720 = vmul.f32 %v1438, %v1680
    %v1721 = vmul.f32 %v1440, %v1680
    %v1722 = vmul.f32 %v1442, %v1680
    %v1723 = vmul.f32 %v1444, %v1680
    %v1724 = vmul.f32 %v1446, %v1680
    %v1725 = vmul.f32 %v1448, %v1680
    %v1726 = vmul.f32 %v1450, %v1680
    %v1727 = vmul.f32 %v1452, %v1680
    %v1728 = vmul.f32 %v1454, %v1680
    %v1729 = vmul.f32 %v1456, %v1680
    %v1730 = vmul.f32 %v1458, %v1680
    %v1731 = vmul.f32 %v1460, %v1680
    %v1732 = vmul.f32 %v1462, %v1680
    %v1733 = vmul.f32 %v1464, %v1680
    %v1734 = vmul.f32 %v1466, %v1680
    %v1735 = vmul.f32 %v1468, %v1680
    %v1736 = vmul.f32 %v1470, %v1680
    %v1737 = vmul.f32 %v1472, %v1680
    %v1738 = vmul.f32 %v1474, %v1680
    %v1739 = vmul.f32 %v1476, %v1680
    %v1740 = vmul.f32 %v1478, %v1680
    %v1741 = vmul.f32 %v1480, %v1680
    %v1742 = vmul.f32 %v1482, %v1680
    %v1743 = vmul.f32 %v1484, %v1680
    %v1744 = vmul.f32 %v1486, %v1680
    %v1745 = vmul.f32 %v1488, %v1680
    %v1746 = vmul.f32 %v1490, %v1680
    %v1747 = vmul.f32 %v1492, %v1680
    %v1748 = vmul.f32 %v1494, %v1680
    %v1749 = vmul.f32 %v1496, %v1680
    %v1750 = vmul.f32 %v1498, %v1680
    %v1751 = vmul.f32 %v1500, %v1680
    %v1752 = vmul.f32 %v1502, %v1680
    %v1753 = vmul.f32 %v1504, %v1680
    %v1754 = vmul.f32 %v1506, %v1680
    %v1755 = vmul.f32 %v1508, %v1680
    %v1756 = vmul.f32 %v1510, %v1680
    %v1757 = vmul.f32 %v1512, %v1680
    %v1758 = vmul.f32 %v1514, %v1680
    %v1759 = vmul.f32 %v1516, %v1680
    %v1760 = vmul.f32 %v1518, %v1680
    %v1761 = vmul.f32 %v1520, %v1680
    %v1762 = vmul.f32 %v1522, %v1680
    %v1763 = vmul.f32 %v1524, %v1680
    %v1764 = vmul.f32 %v1526, %v1680
    %v1765 = vmul.f32 %v1528, %v1680
    %v1766 = vmul.f32 %v1530, %v1680
    %v1767 = vmul.f32 %v1532, %v1680
    %v1768 = vmul.f32 %v1534, %v1680
    %v1769 = vmul.f32 %v1536, %v1680
    %v1770 = vmul.f32 %v1538, %v1680
    %v1771 = vmul.f32 %v1540, %v1680
    %v1772 = vmul.f32 %v1542, %v1680
    %v1773 = vmul.f32 %v1544, %v1680
    %v1774 = vmul.f32 %v1546, %v1680
    %v1775 = vmul.f32 %v1548, %v1680
    %v1776 = vmul.f32 %v1550, %v1680
    %v1777 = vmul.f32 %v1552, %v1680
    %v1778 = vmul.f32 %v1554, %v1680
    %v1779 = vmul.f32 %v1556, %v1680
    %v1780 = vmul.f32 %v1558, %v1680
    %v1781 = vmul.f32 %v1560, %v1680
    %v1782 = vmul.f32 %v1562, %v1680
    %v1783 = vmul.f32 %v1564, %v1680
    %v1784 = vmul.f32 %v1566, %v1680
    %v1785 = vmul.f32 %v1568, %v1680
    %v1786 = vmul.f32 %v1570, %v1680
    %v1787 = vmul.f32 %v1572, %v1680
    %v1788 = vmul.f32 %v1574, %v1680
    %v1789 = vmul.f32 %v1576, %v1680
    %v1790 = vmul.f32 %v1578, %v1680
    %v1791 = vmul.f32 %v1580, %v1680
    %v1792 = vmul.f32 %v1582, %v1680
    %v1793 = vmul.f32 %v1584, %v1680
    %v1794 = vmul.f32 %v1586, %v1680
    %v1795 = vmul.f32 %v1588, %v1680
    %v1796 = vmul.f32 %v1590, %v1680
    %v1797 = vmul.f32 %v1592, %v1680
    %v1798 = vmul.f32 %v1594, %v1680
    %v1799 = vmul.f32 %v1596, %v1680
    %v1800 = vmul.f32 %v1598, %v1680
    %v1801 = vmul.f32 %v1600, %v1680
    %v1802 = vmul.f32 %v1602, %v1680
    %v1803 = vmul.f32 %v1604, %v1680
    %v1804 = vmul.f32 %v1606, %v1680
    %v1805 = vmul.f32 %v1608, %v1680
    %v1806 = vmul.f32 %v1610, %v1680
    %v1807 = vmul.f32 %v1612, %v1680
    %v1808 = vmul.f32 %v1614, %v1680
    %v1809 = vmul.f32 %v1616, %v1680
    %v1810 = vmul.f32 %v1618, %v1680
    %v1811 = vmul.f32 %v1620, %v1680
    %v1812 = vmul.f32 %v1622, %v1680
    %v1813 = vmul.f32 %v1624, %v1680
    %v1814 = vmul.f32 %v1626, %v1680
    %v1815 = vmul.f32 %v1628, %v1680
    %v1816 = vmul.f32 %v1630, %v1680
    %v1817 = vmul.f32 %v1632, %v1680
    %v1818 = vmul.f32 %v1634, %v1680
    %v1819 = vmul.f32 %v1636, %v1680
    %v1820 = vmul.f32 %v1638, %v1680
    %v1821 = vmul.f32 %v1640, %v1680
    %v1822 = vmul.f32 %v1642, %v1680
    %v1823 = vmul.f32 %v1644, %v1680
    %v1824 = vmul.f32 %v1646, %v1680
    %v1825 = vmul.f32 %v1648, %v1680
    %v1826 = vmul.f32 %v1650, %v1680
    %v1827 = vmul.f32 %v1652, %v1680
    %v1828 = vmul.f32 %v1654, %v1680
    %v1829 = vmul.f32 %v1656, %v1680
    %v1830 = vmul.f32 %v1658, %v1680
    %v1831 = vmul.f32 %v1660, %v1680
    %v1832 = vmul.f32 %v1662, %v1680
    %v1833 = vmul.f32 %v1664, %v1680
    %v1834 = vmul.f32 %v1666, %v1680
    %v1835 = vmul.f32 %v1668, %v1680
    %v1836 = vmul.f32 %v1670, %v1680
    %v1837 = vmul.f32 %v1672, %v1680
    %v1838 = vmul.f32 %v1674, %v1680
    %v1839 = vmul.f32 %v1676, %v1680
    %v1840 = vmul.f32 %v1678, %v1680
    %v1841 = vadd.f32 %v1199, %v1681
    %v1842 = vadd.f32 %v1200, %v1682
    %v1843 = vadd.f32 %v1201, %v1683
    %v1844 = vadd.f32 %v1202, %v1684
    %v1845 = vadd.f32 %v1203, %v1685
    %v1846 = vadd.f32 %v1204, %v1686
    %v1847 = vadd.f32 %v1205, %v1687
    %v1848 = vadd.f32 %v1206, %v1688
    %v1849 = vadd.f32 %v1207, %v1689
    %v1850 = vadd.f32 %v1208, %v1690
    %v1851 = vadd.f32 %v1209, %v1691
    %v1852 = vadd.f32 %v1210, %v1692
    %v1853 = vadd.f32 %v1211, %v1693
    %v1854 = vadd.f32 %v1212, %v1694
    %v1855 = vadd.f32 %v1213, %v1695
    %v1856 = vadd.f32 %v1214, %v1696
    %v1857 = vadd.f32 %v1215, %v1697
    %v1858 = vadd.f32 %v1216, %v1698
    %v1859 = vadd.f32 %v1217, %v1699
    %v1860 = vadd.f32 %v1218, %v1700
    %v1861 = vadd.f32 %v1219, %v1701
    %v1862 = vadd.f32 %v1220, %v1702
    %v1863 = vadd.f32 %v1221, %v1703
    %v1864 = vadd.f32 %v1222, %v1704
    %v1865 = vadd.f32 %v1223, %v1705
    %v1866 = vadd.f32 %v1224, %v1706
    %v1867 = vadd.f32 %v1225, %v1707
    %v1868 = vadd.f32 %v1226, %v1708
    %v1869 = vadd.f32 %v1227, %v1709
    %v1870 = vadd.f32 %v1228, %v1710
    %v1871 = vadd.f32 %v1229, %v1711
    %v1872 = vadd.f32 %v1230, %v1712
    %v1873 = vadd.f32 %v1231, %v1713
    %v1874 = vadd.f32 %v1232, %v1714
    %v1875 = vadd.f32 %v1233, %v1715
    %v1876 = vadd.f32 %v1234, %v1716
    %v1877 = vadd.f32 %v1235, %v1717
    %v1878 = vadd.f32 %v1236, %v1718
    %v1879 = vadd.f32 %v1237, %v1719
    %v1880 = vadd.f32 %v1238, %v1720
    %v1881 = vadd.f32 %v1239, %v1721
    %v1882 = vadd.f32 %v1240, %v1722
    %v1883 = vadd.f32 %v1241, %v1723
    %v1884 = vadd.f32 %v1242, %v1724
    %v1885 = vadd.f32 %v1243, %v1725
    %v1886 = vadd.f32 %v1244, %v1726
    %v1887 = vadd.f32 %v1245, %v1727
    %v1888 = vadd.f32 %v1246, %v1728
    %v1889 = vadd.f32 %v1247, %v1729
    %v1890 = vadd.f32 %v1248, %v1730
    %v1891 = vadd.f32 %v1249, %v1731
    %v1892 = vadd.f32 %v1250, %v1732
    %v1893 = vadd.f32 %v1251, %v1733
    %v1894 = vadd.f32 %v1252, %v1734
    %v1895 = vadd.f32 %v1253, %v1735
    %v1896 = vadd.f32 %v1254, %v1736
    %v1897 = vadd.f32 %v1255, %v1737
    %v1898 = vadd.f32 %v1256, %v1738
    %v1899 = vadd.f32 %v1257, %v1739
    %v1900 = vadd.f32 %v1258, %v1740
    %v1901 = vadd.f32 %v1259, %v1741
    %v1902 = vadd.f32 %v1260, %v1742
    %v1903 = vadd.f32 %v1261, %v1743
    %v1904 = vadd.f32 %v1262, %v1744
    %v1905 = vadd.f32 %v1263, %v1745
    %v1906 = vadd.f32 %v1264, %v1746
    %v1907 = vadd.f32 %v1265, %v1747
    %v1908 = vadd.f32 %v1266, %v1748
    %v1909 = vadd.f32 %v1267, %v1749
    %v1910 = vadd.f32 %v1268, %v1750
    %v1911 = vadd.f32 %v1269, %v1751
    %v1912 = vadd.f32 %v1270, %v1752
    %v1913 = vadd.f32 %v1271, %v1753
    %v1914 = vadd.f32 %v1272, %v1754
    %v1915 = vadd.f32 %v1273, %v1755
    %v1916 = vadd.f32 %v1274, %v1756
    %v1917 = vadd.f32 %v1275, %v1757
    %v1918 = vadd.f32 %v1276, %v1758
    %v1919 = vadd.f32 %v1277, %v1759
    %v1920 = vadd.f32 %v1278, %v1760
    %v1921 = vadd.f32 %v1279, %v1761
    %v1922 = vadd.f32 %v1280, %v1762
    %v1923 = vadd.f32 %v1281, %v1763
    %v1924 = vadd.f32 %v1282, %v1764
    %v1925 = vadd.f32 %v1283, %v1765
    %v1926 = vadd.f32 %v1284, %v1766
    %v1927 = vadd.f32 %v1285, %v1767
    %v1928 = vadd.f32 %v1286, %v1768
    %v1929 = vadd.f32 %v1287, %v1769
    %v1930 = vadd.f32 %v1288, %v1770
    %v1931 = vadd.f32 %v1289, %v1771
    %v1932 = vadd.f32 %v1290, %v1772
    %v1933 = vadd.f32 %v1291, %v1773
    %v1934 = vadd.f32 %v1292, %v1774
    %v1935 = vadd.f32 %v1293, %v1775
    %v1936 = vadd.f32 %v1294, %v1776
    %v1937 = vadd.f32 %v1295, %v1777
    %v1938 = vadd.f32 %v1296, %v1778
    %v1939 = vadd.f32 %v1297, %v1779
    %v1940 = vadd.f32 %v1298, %v1780
    %v1941 = vadd.f32 %v1299, %v1781
    %v1942 = vadd.f32 %v1300, %v1782
    %v1943 = vadd.f32 %v1301, %v1783
    %v1944 = vadd.f32 %v1302, %v1784
    %v1945 = vadd.f32 %v1303, %v1785
    %v1946 = vadd.f32 %v1304, %v1786
    %v1947 = vadd.f32 %v1305, %v1787
    %v1948 = vadd.f32 %v1306, %v1788
    %v1949 = vadd.f32 %v1307, %v1789
    %v1950 = vadd.f32 %v1308, %v1790
    %v1951 = vadd.f32 %v1309, %v1791
    %v1952 = vadd.f32 %v1310, %v1792
    %v1953 = vadd.f32 %v1311, %v1793
    %v1954 = vadd.f32 %v1312, %v1794
    %v1955 = vadd.f32 %v1313, %v1795
    %v1956 = vadd.f32 %v1314, %v1796
    %v1957 = vadd.f32 %v1315, %v1797
    %v1958 = vadd.f32 %v1316, %v1798
    %v1959 = vadd.f32 %v1317, %v1799
    %v1960 = vadd.f32 %v1318, %v1800
    %v1961 = vadd.f32 %v1319, %v1801
    %v1962 = vadd.f32 %v1320, %v1802
    %v1963 = vadd.f32 %v1321, %v1803
    %v1964 = vadd.f32 %v1322, %v1804
    %v1965 = vadd.f32 %v1323, %v1805
    %v1966 = vadd.f32 %v1324, %v1806
    %v1967 = vadd.f32 %v1325, %v1807
    %v1968 = vadd.f32 %v1326, %v1808
    %v1969 = vadd.f32 %v1327, %v1809
    %v1970 = vadd.f32 %v1328, %v1810
    %v1971 = vadd.f32 %v1329, %v1811
    %v1972 = vadd.f32 %v1330, %v1812
    %v1973 = vadd.f32 %v1331, %v1813
    %v1974 = vadd.f32 %v1332, %v1814
    %v1975 = vadd.f32 %v1333, %v1815
    %v1976 = vadd.f32 %v1334, %v1816
    %v1977 = vadd.f32 %v1335, %v1817
    %v1978 = vadd.f32 %v1336, %v1818
    %v1979 = vadd.f32 %v1337, %v1819
    %v1980 = vadd.f32 %v1338, %v1820
    %v1981 = vadd.f32 %v1339, %v1821
    %v1982 = vadd.f32 %v1340, %v1822
    %v1983 = vadd.f32 %v1341, %v1823
    %v1984 = vadd.f32 %v1342, %v1824
    %v1985 = vadd.f32 %v1343, %v1825
    %v1986 = vadd.f32 %v1344, %v1826
    %v1987 = vadd.f32 %v1345, %v1827
    %v1988 = vadd.f32 %v1346, %v1828
    %v1989 = vadd.f32 %v1347, %v1829
    %v1990 = vadd.f32 %v1348, %v1830
    %v1991 = vadd.f32 %v1349, %v1831
    %v1992 = vadd.f32 %v1350, %v1832
    %v1993 = vadd.f32 %v1351, %v1833
    %v1994 = vadd.f32 %v1352, %v1834
    %v1995 = vadd.f32 %v1353, %v1835
    %v1996 = vadd.f32 %v1354, %v1836
    %v1997 = vadd.f32 %v1355, %v1837
    %v1998 = vadd.f32 %v1356, %v1838
    %v1999 = vadd.f32 %v1357, %v1839
    %v2000 = vadd.f32 %v1358, %v1840
    %v2001 = vrot.slane %v25, 1
    %v2002 = vrot.slane %v41, 1
    %v2003 = vrot.slane %v57, 1
    %v2004 = vrot.slane %v73, 1
    %v2005 = vrot.slane %v89, 1
    %v2006 = vrot.slane %v105, 1
    %v2007 = vrot.slane %v121, 1
    %v2008 = vrot.slane %v137, 1
    %v2009 = vrot.slane %v153, 1
    %v2010 = vrot.slane %v169, 1
    %v2011 = vrot.slane %v26, 1
    %v2012 = vrot.slane %v42, 1
    %v2013 = vrot.slane %v58, 1
    %v2014 = vrot.slane %v74, 1
    %v2015 = vrot.slane %v90, 1
    %v2016 = vrot.slane %v106, 1
    %v2017 = vrot.slane %v122, 1
    %v2018 = vrot.slane %v138, 1
    %v2019 = vrot.slane %v154, 1
    %v2020 = vrot.slane %v170, 1
    %v2021 = vrot.slane %v27, 1
    %v2022 = vrot.slane %v43, 1
    %v2023 = vrot.slane %v59, 1
    %v2024 = vrot.slane %v75, 1
    %v2025 = vrot.slane %v91, 1
    %v2026 = vrot.slane %v107, 1
    %v2027 = vrot.slane %v123, 1
    %v2028 = vrot.slane %v139, 1
    %v2029 = vrot.slane %v155, 1
    %v2030 = vrot.slane %v171, 1
    %v2031 = vrot.slane %v28, 1
    %v2032 = vrot.slane %v44, 1
    %v2033 = vrot.slane %v60, 1
    %v2034 = vrot.slane %v76, 1
    %v2035 = vrot.slane %v92, 1
    %v2036 = vrot.slane %v108, 1
    %v2037 = vrot.slane %v124, 1
    %v2038 = vrot.slane %v140, 1
    %v2039 = vrot.slane %v156, 1
    %v2040 = vrot.slane %v172, 1
    %v2041 = vrot.slane %v29, 1
    %v2042 = vrot.slane %v45, 1
    %v2043 = vrot.slane %v61, 1
    %v2044 = vrot.slane %v77, 1
    %v2045 = vrot.slane %v93, 1
    %v2046 = vrot.slane %v109, 1
    %v2047 = vrot.slane %v125, 1
    %v2048 = vrot.slane %v141, 1
    %v2049 = vrot.slane %v157, 1
    %v2050 = vrot.slane %v173, 1
    %v2051 = vrot.slane %v30, 1
    %v2052 = vrot.slane %v46, 1
    %v2053 = vrot.slane %v62, 1
    %v2054 = vrot.slane %v78, 1
    %v2055 = vrot.slane %v94, 1
    %v2056 = vrot.slane %v110, 1
    %v2057 = vrot.slane %v126, 1
    %v2058 = vrot.slane %v142, 1
    %v2059 = vrot.slane %v158, 1
    %v2060 = vrot.slane %v174, 1
    %v2061 = vrot.slane %v31, 1
    %v2062 = vrot.slane %v47, 1
    %v2063 = vrot.slane %v63, 1
    %v2064 = vrot.slane %v79, 1
    %v2065 = vrot.slane %v95, 1
    %v2066 = vrot.slane %v111, 1
    %v2067 = vrot.slane %v127, 1
    %v2068 = vrot.slane %v143, 1
    %v2069 = vrot.slane %v159, 1
    %v2070 = vrot.slane %v175, 1
    %v2071 = vrot.slane %v32, 1
    %v2072 = vrot.slane %v48, 1
    %v2073 = vrot.slane %v64, 1
    %v2074 = vrot.slane %v80, 1
    %v2075 = vrot.slane %v96, 1
    %v2076 = vrot.slane %v112, 1
    %v2077 = vrot.slane %v128, 1
    %v2078 = vrot.slane %v144, 1
    %v2079 = vrot.slane %v160, 1
    %v2080 = vrot.slane %v176, 1
    %v2081 = vrot.slane %v33, 1
    %v2082 = vrot.slane %v49, 1
    %v2083 = vrot.slane %v65, 1
    %v2084 = vrot.slane %v81, 1
    %v2085 = vrot.slane %v97, 1
    %v2086 = vrot.slane %v113, 1
    %v2087 = vrot.slane %v129, 1
    %v2088 = vrot.slane %v145, 1
    %v2089 = vrot.slane %v161, 1
    %v2090 = vrot.slane %v177, 1
    %v2091 = vrot.slane %v34, 1
    %v2092 = vrot.slane %v50, 1
    %v2093 = vrot.slane %v66, 1
    %v2094 = vrot.slane %v82, 1
    %v2095 = vrot.slane %v98, 1
    %v2096 = vrot.slane %v114, 1
    %v2097 = vrot.slane %v130, 1
    %v2098 = vrot.slane %v146, 1
    %v2099 = vrot.slane %v162, 1
    %v2100 = vrot.slane %v178, 1
    %v2101 = vrot.slane %v35, 1
    %v2102 = vrot.slane %v51, 1
    %v2103 = vrot.slane %v67, 1
    %v2104 = vrot.slane %v83, 1
    %v2105 = vrot.slane %v99, 1
    %v2106 = vrot.slane %v115, 1
    %v2107 = vrot.slane %v131, 1
    %v2108 = vrot.slane %v147, 1
    %v2109 = vrot.slane %v163, 1
    %v2110 = vrot.slane %v179, 1
    %v2111 = vrot.slane %v36, 1
    %v2112 = vrot.slane %v52, 1
    %v2113 = vrot.slane %v68, 1
    %v2114 = vrot.slane %v84, 1
    %v2115 = vrot.slane %v100, 1
    %v2116 = vrot.slane %v116, 1
    %v2117 = vrot.slane %v132, 1
    %v2118 = vrot.slane %v148, 1
    %v2119 = vrot.slane %v164, 1
    %v2120 = vrot.slane %v180, 1
    %v2121 = vrot.slane %v37, 1
    %v2122 = vrot.slane %v53, 1
    %v2123 = vrot.slane %v69, 1
    %v2124 = vrot.slane %v85, 1
    %v2125 = vrot.slane %v101, 1
    %v2126 = vrot.slane %v117, 1
    %v2127 = vrot.slane %v133, 1
    %v2128 = vrot.slane %v149, 1
    %v2129 = vrot.slane %v165, 1
    %v2130 = vrot.slane %v181, 1
    %v2131 = vrot.slane %v38, 1
    %v2132 = vrot.slane %v54, 1
    %v2133 = vrot.slane %v70, 1
    %v2134 = vrot.slane %v86, 1
    %v2135 = vrot.slane %v102, 1
    %v2136 = vrot.slane %v118, 1
    %v2137 = vrot.slane %v134, 1
    %v2138 = vrot.slane %v150, 1
    %v2139 = vrot.slane %v166, 1
    %v2140 = vrot.slane %v182, 1
    %v2141 = vrot.slane %v39, 1
    %v2142 = vrot.slane %v55, 1
    %v2143 = vrot.slane %v71, 1
    %v2144 = vrot.slane %v87, 1
    %v2145 = vrot.slane %v103, 1
    %v2146 = vrot.slane %v119, 1
    %v2147 = vrot.slane %v135, 1
    %v2148 = vrot.slane %v151, 1
    %v2149 = vrot.slane %v167, 1
    %v2150 = vrot.slane %v183, 1
    %v2151 = vrot.slane %v40, 1
    %v2152 = vrot.slane %v56, 1
    %v2153 = vrot.slane %v72, 1
    %v2154 = vrot.slane %v88, 1
    %v2155 = vrot.slane %v104, 1
    %v2156 = vrot.slane %v120, 1
    %v2157 = vrot.slane %v136, 1
    %v2158 = vrot.slane %v152, 1
    %v2159 = vrot.slane %v168, 1
    %v2160 = vrot.slane %v184, 1
    %vm2161 = vcmp.lt.s32.totalorder %v186, 7
    %v2162 = vsel %vm2161, %v2141, %v2151
    %v2163 = vsel %vm2161, %v2142, %v2152
    %v2164 = vsel %vm2161, %v2143, %v2153
    %v2165 = vsel %vm2161, %v2144, %v2154
    %v2166 = vsel %vm2161, %v2145, %v2155
    %v2167 = vsel %vm2161, %v2146, %v2156
    %v2168 = vsel %vm2161, %v2147, %v2157
    %v2169 = vsel %vm2161, %v2148, %v2158
    %v2170 = vsel %vm2161, %v2149, %v2159
    %v2171 = vsel %vm2161, %v2150, %v2160
    %v2172 = vsel %vm2161, %v2131, %v2141
    %v2173 = vsel %vm2161, %v2132, %v2142
    %v2174 = vsel %vm2161, %v2133, %v2143
    %v2175 = vsel %vm2161, %v2134, %v2144
    %v2176 = vsel %vm2161, %v2135, %v2145
    %v2177 = vsel %vm2161, %v2136, %v2146
    %v2178 = vsel %vm2161, %v2137, %v2147
    %v2179 = vsel %vm2161, %v2138, %v2148
    %v2180 = vsel %vm2161, %v2139, %v2149
    %v2181 = vsel %vm2161, %v2140, %v2150
    %v2182 = vsel %vm2161, %v2121, %v2131
    %v2183 = vsel %vm2161, %v2122, %v2132
    %v2184 = vsel %vm2161, %v2123, %v2133
    %v2185 = vsel %vm2161, %v2124, %v2134
    %v2186 = vsel %vm2161, %v2125, %v2135
    %v2187 = vsel %vm2161, %v2126, %v2136
    %v2188 = vsel %vm2161, %v2127, %v2137
    %v2189 = vsel %vm2161, %v2128, %v2138
    %v2190 = vsel %vm2161, %v2129, %v2139
    %v2191 = vsel %vm2161, %v2130, %v2140
    %v2192 = vsel %vm2161, %v2111, %v2121
    %v2193 = vsel %vm2161, %v2112, %v2122
    %v2194 = vsel %vm2161, %v2113, %v2123
    %v2195 = vsel %vm2161, %v2114, %v2124
    %v2196 = vsel %vm2161, %v2115, %v2125
    %v2197 = vsel %vm2161, %v2116, %v2126
    %v2198 = vsel %vm2161, %v2117, %v2127
    %v2199 = vsel %vm2161, %v2118, %v2128
    %v2200 = vsel %vm2161, %v2119, %v2129
    %v2201 = vsel %vm2161, %v2120, %v2130
    %v2202 = vsel %vm2161, %v2101, %v2111
    %v2203 = vsel %vm2161, %v2102, %v2112
    %v2204 = vsel %vm2161, %v2103, %v2113
    %v2205 = vsel %vm2161, %v2104, %v2114
    %v2206 = vsel %vm2161, %v2105, %v2115
    %v2207 = vsel %vm2161, %v2106, %v2116
    %v2208 = vsel %vm2161, %v2107, %v2117
    %v2209 = vsel %vm2161, %v2108, %v2118
    %v2210 = vsel %vm2161, %v2109, %v2119
    %v2211 = vsel %vm2161, %v2110, %v2120
    %v2212 = vsel %vm2161, %v2091, %v2101
    %v2213 = vsel %vm2161, %v2092, %v2102
    %v2214 = vsel %vm2161, %v2093, %v2103
    %v2215 = vsel %vm2161, %v2094, %v2104
    %v2216 = vsel %vm2161, %v2095, %v2105
    %v2217 = vsel %vm2161, %v2096, %v2106
    %v2218 = vsel %vm2161, %v2097, %v2107
    %v2219 = vsel %vm2161, %v2098, %v2108
    %v2220 = vsel %vm2161, %v2099, %v2109
    %v2221 = vsel %vm2161, %v2100, %v2110
    %v2222 = vsel %vm2161, %v2081, %v2091
    %v2223 = vsel %vm2161, %v2082, %v2092
    %v2224 = vsel %vm2161, %v2083, %v2093
    %v2225 = vsel %vm2161, %v2084, %v2094
    %v2226 = vsel %vm2161, %v2085, %v2095
    %v2227 = vsel %vm2161, %v2086, %v2096
    %v2228 = vsel %vm2161, %v2087, %v2097
    %v2229 = vsel %vm2161, %v2088, %v2098
    %v2230 = vsel %vm2161, %v2089, %v2099
    %v2231 = vsel %vm2161, %v2090, %v2100
    %v2232 = vsel %vm2161, %v2071, %v2081
    %v2233 = vsel %vm2161, %v2072, %v2082
    %v2234 = vsel %vm2161, %v2073, %v2083
    %v2235 = vsel %vm2161, %v2074, %v2084
    %v2236 = vsel %vm2161, %v2075, %v2085
    %v2237 = vsel %vm2161, %v2076, %v2086
    %v2238 = vsel %vm2161, %v2077, %v2087
    %v2239 = vsel %vm2161, %v2078, %v2088
    %v2240 = vsel %vm2161, %v2079, %v2089
    %v2241 = vsel %vm2161, %v2080, %v2090
    %v2242 = vsel %vm2161, %v2061, %v2071
    %v2243 = vsel %vm2161, %v2062, %v2072
    %v2244 = vsel %vm2161, %v2063, %v2073
    %v2245 = vsel %vm2161, %v2064, %v2074
    %v2246 = vsel %vm2161, %v2065, %v2075
    %v2247 = vsel %vm2161, %v2066, %v2076
    %v2248 = vsel %vm2161, %v2067, %v2077
    %v2249 = vsel %vm2161, %v2068, %v2078
    %v2250 = vsel %vm2161, %v2069, %v2079
    %v2251 = vsel %vm2161, %v2070, %v2080
    %v2252 = vsel %vm2161, %v2051, %v2061
    %v2253 = vsel %vm2161, %v2052, %v2062
    %v2254 = vsel %vm2161, %v2053, %v2063
    %v2255 = vsel %vm2161, %v2054, %v2064
    %v2256 = vsel %vm2161, %v2055, %v2065
    %v2257 = vsel %vm2161, %v2056, %v2066
    %v2258 = vsel %vm2161, %v2057, %v2067
    %v2259 = vsel %vm2161, %v2058, %v2068
    %v2260 = vsel %vm2161, %v2059, %v2069
    %v2261 = vsel %vm2161, %v2060, %v2070
    %v2262 = vsel %vm2161, %v2041, %v2051
    %v2263 = vsel %vm2161, %v2042, %v2052
    %v2264 = vsel %vm2161, %v2043, %v2053
    %v2265 = vsel %vm2161, %v2044, %v2054
    %v2266 = vsel %vm2161, %v2045, %v2055
    %v2267 = vsel %vm2161, %v2046, %v2056
    %v2268 = vsel %vm2161, %v2047, %v2057
    %v2269 = vsel %vm2161, %v2048, %v2058
    %v2270 = vsel %vm2161, %v2049, %v2059
    %v2271 = vsel %vm2161, %v2050, %v2060
    %v2272 = vsel %vm2161, %v2031, %v2041
    %v2273 = vsel %vm2161, %v2032, %v2042
    %v2274 = vsel %vm2161, %v2033, %v2043
    %v2275 = vsel %vm2161, %v2034, %v2044
    %v2276 = vsel %vm2161, %v2035, %v2045
    %v2277 = vsel %vm2161, %v2036, %v2046
    %v2278 = vsel %vm2161, %v2037, %v2047
    %v2279 = vsel %vm2161, %v2038, %v2048
    %v2280 = vsel %vm2161, %v2039, %v2049
    %v2281 = vsel %vm2161, %v2040, %v2050
    %v2282 = vsel %vm2161, %v2021, %v2031
    %v2283 = vsel %vm2161, %v2022, %v2032
    %v2284 = vsel %vm2161, %v2023, %v2033
    %v2285 = vsel %vm2161, %v2024, %v2034
    %v2286 = vsel %vm2161, %v2025, %v2035
    %v2287 = vsel %vm2161, %v2026, %v2036
    %v2288 = vsel %vm2161, %v2027, %v2037
    %v2289 = vsel %vm2161, %v2028, %v2038
    %v2290 = vsel %vm2161, %v2029, %v2039
    %v2291 = vsel %vm2161, %v2030, %v2040
    %v2292 = vsel %vm2161, %v2011, %v2021
    %v2293 = vsel %vm2161, %v2012, %v2022
    %v2294 = vsel %vm2161, %v2013, %v2023
    %v2295 = vsel %vm2161, %v2014, %v2024
    %v2296 = vsel %vm2161, %v2015, %v2025
    %v2297 = vsel %vm2161, %v2016, %v2026
    %v2298 = vsel %vm2161, %v2017, %v2027
    %v2299 = vsel %vm2161, %v2018, %v2028
    %v2300 = vsel %vm2161, %v2019, %v2029
    %v2301 = vsel %vm2161, %v2020, %v2030
    %v2302 = vsel %vm2161, %v2001, %v2011
    %v2303 = vsel %vm2161, %v2002, %v2012
    %v2304 = vsel %vm2161, %v2003, %v2013
    %v2305 = vsel %vm2161, %v2004, %v2014
    %v2306 = vsel %vm2161, %v2005, %v2015
    %v2307 = vsel %vm2161, %v2006, %v2016
    %v2308 = vsel %vm2161, %v2007, %v2017
    %v2309 = vsel %vm2161, %v2008, %v2018
    %v2310 = vsel %vm2161, %v2009, %v2019
    %v2311 = vsel %vm2161, %v2010, %v2020
    %v2312 = vsel %vm2161, %v2151, %v2001
    %v2313 = vsel %vm2161, %v2152, %v2002
    %v2314 = vsel %vm2161, %v2153, %v2003
    %v2315 = vsel %vm2161, %v2154, %v2004
    %v2316 = vsel %vm2161, %v2155, %v2005
    %v2317 = vsel %vm2161, %v2156, %v2006
    %v2318 = vsel %vm2161, %v2157, %v2007
    %v2319 = vsel %vm2161, %v2158, %v2008
    %v2320 = vsel %vm2161, %v2159, %v2009
    %v2321 = vsel %vm2161, %v2160, %v2010
    %vm2322 = vcmp.lt.s32.totalorder %v186, 127
    %vm2323 = vcmp.lt.s32.totalorder %v187, 127
    %vm2324 = vcmp.lt.s32.totalorder %v188, 127
    %vm2325 = vcmp.lt.s32.totalorder %v189, 127
    %vm2326 = vcmp.lt.s32.totalorder %v190, 127
    %vm2327 = vcmp.lt.s32.totalorder %v191, 127
    %vm2328 = vcmp.lt.s32.totalorder %v192, 127
    %vm2329 = vcmp.lt.s32.totalorder %v193, 127
    %vm2330 = vcmp.lt.s32.totalorder %v194, 127
    %vm2331 = vcmp.lt.s32.totalorder %v195, 127
    %vm2332 = vcmp.lt.s32.totalorder %v196, 127
    %vm2333 = vcmp.lt.s32.totalorder %v197, 127
    %vm2334 = vcmp.lt.s32.totalorder %v198, 127
    %vm2335 = vcmp.lt.s32.totalorder %v199, 127
    %vm2336 = vcmp.lt.s32.totalorder %v200, 127
    %vm2337 = vcmp.lt.s32.totalorder %v201, 127
    %v2338 = vsel %vm2322, 20.0, 0.0
    %v2339 = vsel %vm2323, 20.0, 0.0
    %v2340 = vsel %vm2324, 20.0, 0.0
    %v2341 = vsel %vm2325, 20.0, 0.0
    %v2342 = vsel %vm2326, 20.0, 0.0
    %v2343 = vsel %vm2327, 20.0, 0.0
    %v2344 = vsel %vm2328, 20.0, 0.0
    %v2345 = vsel %vm2329, 20.0, 0.0
    %v2346 = vsel %vm2330, 20.0, 0.0
    %v2347 = vsel %vm2331, 20.0, 0.0
    %v2348 = vsel %vm2332, 20.0, 0.0
    %v2349 = vsel %vm2333, 20.0, 0.0
    %v2350 = vsel %vm2334, 20.0, 0.0
    %v2351 = vsel %vm2335, 20.0, 0.0
    %v2352 = vsel %vm2336, 20.0, 0.0
    %v2353 = vsel %vm2337, 20.0, 0.0
    %v2354 = vmul.f32 %v2302, %v2338
    %v2355 = vmul.f32 %v2292, %v2339
    %v2356 = vmul.f32 %v2282, %v2340
    %v2357 = vmul.f32 %v2272, %v2341
    %v2358 = vmul.f32 %v2262, %v2342
    %v2359 = vmul.f32 %v2252, %v2343
    %v2360 = vmul.f32 %v2242, %v2344
    %v2361 = vmul.f32 %v2232, %v2345
    %v2362 = vmul.f32 %v2222, %v2346
    %v2363 = vmul.f32 %v2212, %v2347
    %v2364 = vmul.f32 %v2202, %v2348
    %v2365 = vmul.f32 %v2192, %v2349
    %v2366 = vmul.f32 %v2182, %v2350
    %v2367 = vmul.f32 %v2172, %v2351
    %v2368 = vmul.f32 %v2162, %v2352
    %v2369 = vmul.f32 %v2312, %v2353
    %v2370 = vmul.f32 %v2303, %v2338
    %v2371 = vmul.f32 %v2293, %v2339
    %v2372 = vmul.f32 %v2283, %v2340
    %v2373 = vmul.f32 %v2273, %v2341
    %v2374 = vmul.f32 %v2263, %v2342
    %v2375 = vmul.f32 %v2253, %v2343
    %v2376 = vmul.f32 %v2243, %v2344
    %v2377 = vmul.f32 %v2233, %v2345
    %v2378 = vmul.f32 %v2223, %v2346
    %v2379 = vmul.f32 %v2213, %v2347
    %v2380 = vmul.f32 %v2203, %v2348
    %v2381 = vmul.f32 %v2193, %v2349
    %v2382 = vmul.f32 %v2183, %v2350
    %v2383 = vmul.f32 %v2173, %v2351
    %v2384 = vmul.f32 %v2163, %v2352
    %v2385 = vmul.f32 %v2313, %v2353
    %v2386 = vmul.f32 %v2304, %v2338
    %v2387 = vmul.f32 %v2294, %v2339
    %v2388 = vmul.f32 %v2284, %v2340
    %v2389 = vmul.f32 %v2274, %v2341
    %v2390 = vmul.f32 %v2264, %v2342
    %v2391 = vmul.f32 %v2254, %v2343
    %v2392 = vmul.f32 %v2244, %v2344
    %v2393 = vmul.f32 %v2234, %v2345
    %v2394 = vmul.f32 %v2224, %v2346
    %v2395 = vmul.f32 %v2214, %v2347
    %v2396 = vmul.f32 %v2204, %v2348
    %v2397 = vmul.f32 %v2194, %v2349
    %v2398 = vmul.f32 %v2184, %v2350
    %v2399 = vmul.f32 %v2174, %v2351
    %v2400 = vmul.f32 %v2164, %v2352
    %v2401 = vmul.f32 %v2314, %v2353
    %v2402 = vmul.f32 %v2305, %v2338
    %v2403 = vmul.f32 %v2295, %v2339
    %v2404 = vmul.f32 %v2285, %v2340
    %v2405 = vmul.f32 %v2275, %v2341
    %v2406 = vmul.f32 %v2265, %v2342
    %v2407 = vmul.f32 %v2255, %v2343
    %v2408 = vmul.f32 %v2245, %v2344
    %v2409 = vmul.f32 %v2235, %v2345
    %v2410 = vmul.f32 %v2225, %v2346
    %v2411 = vmul.f32 %v2215, %v2347
    %v2412 = vmul.f32 %v2205, %v2348
    %v2413 = vmul.f32 %v2195, %v2349
    %v2414 = vmul.f32 %v2185, %v2350
    %v2415 = vmul.f32 %v2175, %v2351
    %v2416 = vmul.f32 %v2165, %v2352
    %v2417 = vmul.f32 %v2315, %v2353
    %v2418 = vmul.f32 %v2306, %v2338
    %v2419 = vmul.f32 %v2296, %v2339
    %v2420 = vmul.f32 %v2286, %v2340
    %v2421 = vmul.f32 %v2276, %v2341
    %v2422 = vmul.f32 %v2266, %v2342
    %v2423 = vmul.f32 %v2256, %v2343
    %v2424 = vmul.f32 %v2246, %v2344
    %v2425 = vmul.f32 %v2236, %v2345
    %v2426 = vmul.f32 %v2226, %v2346
    %v2427 = vmul.f32 %v2216, %v2347
    %v2428 = vmul.f32 %v2206, %v2348
    %v2429 = vmul.f32 %v2196, %v2349
    %v2430 = vmul.f32 %v2186, %v2350
    %v2431 = vmul.f32 %v2176, %v2351
    %v2432 = vmul.f32 %v2166, %v2352
    %v2433 = vmul.f32 %v2316, %v2353
    %v2434 = vmul.f32 %v2307, %v2338
    %v2435 = vmul.f32 %v2297, %v2339
    %v2436 = vmul.f32 %v2287, %v2340
    %v2437 = vmul.f32 %v2277, %v2341
    %v2438 = vmul.f32 %v2267, %v2342
    %v2439 = vmul.f32 %v2257, %v2343
    %v2440 = vmul.f32 %v2247, %v2344
    %v2441 = vmul.f32 %v2237, %v2345
    %v2442 = vmul.f32 %v2227, %v2346
    %v2443 = vmul.f32 %v2217, %v2347
    %v2444 = vmul.f32 %v2207, %v2348
    %v2445 = vmul.f32 %v2197, %v2349
    %v2446 = vmul.f32 %v2187, %v2350
    %v2447 = vmul.f32 %v2177, %v2351
    %v2448 = vmul.f32 %v2167, %v2352
    %v2449 = vmul.f32 %v2317, %v2353
    %v2450 = vmul.f32 %v2308, %v2338
    %v2451 = vmul.f32 %v2298, %v2339
    %v2452 = vmul.f32 %v2288, %v2340
    %v2453 = vmul.f32 %v2278, %v2341
    %v2454 = vmul.f32 %v2268, %v2342
    %v2455 = vmul.f32 %v2258, %v2343
    %v2456 = vmul.f32 %v2248, %v2344
    %v2457 = vmul.f32 %v2238, %v2345
    %v2458 = vmul.f32 %v2228, %v2346
    %v2459 = vmul.f32 %v2218, %v2347
    %v2460 = vmul.f32 %v2208, %v2348
    %v2461 = vmul.f32 %v2198, %v2349
    %v2462 = vmul.f32 %v2188, %v2350
    %v2463 = vmul.f32 %v2178, %v2351
    %v2464 = vmul.f32 %v2168, %v2352
    %v2465 = vmul.f32 %v2318, %v2353
    %v2466 = vmul.f32 %v2309, %v2338
    %v2467 = vmul.f32 %v2299, %v2339
    %v2468 = vmul.f32 %v2289, %v2340
    %v2469 = vmul.f32 %v2279, %v2341
    %v2470 = vmul.f32 %v2269, %v2342
    %v2471 = vmul.f32 %v2259, %v2343
    %v2472 = vmul.f32 %v2249, %v2344
    %v2473 = vmul.f32 %v2239, %v2345
    %v2474 = vmul.f32 %v2229, %v2346
    %v2475 = vmul.f32 %v2219, %v2347
    %v2476 = vmul.f32 %v2209, %v2348
    %v2477 = vmul.f32 %v2199, %v2349
    %v2478 = vmul.f32 %v2189, %v2350
    %v2479 = vmul.f32 %v2179, %v2351
    %v2480 = vmul.f32 %v2169, %v2352
    %v2481 = vmul.f32 %v2319, %v2353
    %v2482 = vmul.f32 %v2310, %v2338
    %v2483 = vmul.f32 %v2300, %v2339
    %v2484 = vmul.f32 %v2290, %v2340
    %v2485 = vmul.f32 %v2280, %v2341
    %v2486 = vmul.f32 %v2270, %v2342
    %v2487 = vmul.f32 %v2260, %v2343
    %v2488 = vmul.f32 %v2250, %v2344
    %v2489 = vmul.f32 %v2240, %v2345
    %v2490 = vmul.f32 %v2230, %v2346
    %v2491 = vmul.f32 %v2220, %v2347
    %v2492 = vmul.f32 %v2210, %v2348
    %v2493 = vmul.f32 %v2200, %v2349
    %v2494 = vmul.f32 %v2190, %v2350
    %v2495 = vmul.f32 %v2180, %v2351
    %v2496 = vmul.f32 %v2170, %v2352
    %v2497 = vmul.f32 %v2320, %v2353
    %v2498 = vmul.f32 %v2311, %v2338
    %v2499 = vmul.f32 %v2301, %v2339
    %v2500 = vmul.f32 %v2291, %v2340
    %v2501 = vmul.f32 %v2281, %v2341
    %v2502 = vmul.f32 %v2271, %v2342
    %v2503 = vmul.f32 %v2261, %v2343
    %v2504 = vmul.f32 %v2251, %v2344
    %v2505 = vmul.f32 %v2241, %v2345
    %v2506 = vmul.f32 %v2231, %v2346
    %v2507 = vmul.f32 %v2221, %v2347
    %v2508 = vmul.f32 %v2211, %v2348
    %v2509 = vmul.f32 %v2201, %v2349
    %v2510 = vmul.f32 %v2191, %v2350
    %v2511 = vmul.f32 %v2181, %v2351
    %v2512 = vmul.f32 %v2171, %v2352
    %v2513 = vmul.f32 %v2321, %v2353
    %v2514 = vadd.f32 %v1841, %v2354
    %v2515 = vadd.f32 %v1842, %v2355
    %v2516 = vadd.f32 %v1843, %v2356
    %v2517 = vadd.f32 %v1844, %v2357
    %v2518 = vadd.f32 %v1845, %v2358
    %v2519 = vadd.f32 %v1846, %v2359
    %v2520 = vadd.f32 %v1847, %v2360
    %v2521 = vadd.f32 %v1848, %v2361
    %v2522 = vadd.f32 %v1849, %v2362
    %v2523 = vadd.f32 %v1850, %v2363
    %v2524 = vadd.f32 %v1851, %v2364
    %v2525 = vadd.f32 %v1852, %v2365
    %v2526 = vadd.f32 %v1853, %v2366
    %v2527 = vadd.f32 %v1854, %v2367
    %v2528 = vadd.f32 %v1855, %v2368
    %v2529 = vadd.f32 %v1856, %v2369
    %v2530 = vadd.f32 %v1857, %v2370
    %v2531 = vadd.f32 %v1858, %v2371
    %v2532 = vadd.f32 %v1859, %v2372
    %v2533 = vadd.f32 %v1860, %v2373
    %v2534 = vadd.f32 %v1861, %v2374
    %v2535 = vadd.f32 %v1862, %v2375
    %v2536 = vadd.f32 %v1863, %v2376
    %v2537 = vadd.f32 %v1864, %v2377
    %v2538 = vadd.f32 %v1865, %v2378
    %v2539 = vadd.f32 %v1866, %v2379
    %v2540 = vadd.f32 %v1867, %v2380
    %v2541 = vadd.f32 %v1868, %v2381
    %v2542 = vadd.f32 %v1869, %v2382
    %v2543 = vadd.f32 %v1870, %v2383
    %v2544 = vadd.f32 %v1871, %v2384
    %v2545 = vadd.f32 %v1872, %v2385
    %v2546 = vadd.f32 %v1873, %v2386
    %v2547 = vadd.f32 %v1874, %v2387
    %v2548 = vadd.f32 %v1875, %v2388
    %v2549 = vadd.f32 %v1876, %v2389
    %v2550 = vadd.f32 %v1877, %v2390
    %v2551 = vadd.f32 %v1878, %v2391
    %v2552 = vadd.f32 %v1879, %v2392
    %v2553 = vadd.f32 %v1880, %v2393
    %v2554 = vadd.f32 %v1881, %v2394
    %v2555 = vadd.f32 %v1882, %v2395
    %v2556 = vadd.f32 %v1883, %v2396
    %v2557 = vadd.f32 %v1884, %v2397
    %v2558 = vadd.f32 %v1885, %v2398
    %v2559 = vadd.f32 %v1886, %v2399
    %v2560 = vadd.f32 %v1887, %v2400
    %v2561 = vadd.f32 %v1888, %v2401
    %v2562 = vadd.f32 %v1889, %v2402
    %v2563 = vadd.f32 %v1890, %v2403
    %v2564 = vadd.f32 %v1891, %v2404
    %v2565 = vadd.f32 %v1892, %v2405
    %v2566 = vadd.f32 %v1893, %v2406
    %v2567 = vadd.f32 %v1894, %v2407
    %v2568 = vadd.f32 %v1895, %v2408
    %v2569 = vadd.f32 %v1896, %v2409
    %v2570 = vadd.f32 %v1897, %v2410
    %v2571 = vadd.f32 %v1898, %v2411
    %v2572 = vadd.f32 %v1899, %v2412
    %v2573 = vadd.f32 %v1900, %v2413
    %v2574 = vadd.f32 %v1901, %v2414
    %v2575 = vadd.f32 %v1902, %v2415
    %v2576 = vadd.f32 %v1903, %v2416
    %v2577 = vadd.f32 %v1904, %v2417
    %v2578 = vadd.f32 %v1905, %v2418
    %v2579 = vadd.f32 %v1906, %v2419
    %v2580 = vadd.f32 %v1907, %v2420
    %v2581 = vadd.f32 %v1908, %v2421
    %v2582 = vadd.f32 %v1909, %v2422
    %v2583 = vadd.f32 %v1910, %v2423
    %v2584 = vadd.f32 %v1911, %v2424
    %v2585 = vadd.f32 %v1912, %v2425
    %v2586 = vadd.f32 %v1913, %v2426
    %v2587 = vadd.f32 %v1914, %v2427
    %v2588 = vadd.f32 %v1915, %v2428
    %v2589 = vadd.f32 %v1916, %v2429
    %v2590 = vadd.f32 %v1917, %v2430
    %v2591 = vadd.f32 %v1918, %v2431
    %v2592 = vadd.f32 %v1919, %v2432
    %v2593 = vadd.f32 %v1920, %v2433
    %v2594 = vadd.f32 %v1921, %v2434
    %v2595 = vadd.f32 %v1922, %v2435
    %v2596 = vadd.f32 %v1923, %v2436
    %v2597 = vadd.f32 %v1924, %v2437
    %v2598 = vadd.f32 %v1925, %v2438
    %v2599 = vadd.f32 %v1926, %v2439
    %v2600 = vadd.f32 %v1927, %v2440
    %v2601 = vadd.f32 %v1928, %v2441
    %v2602 = vadd.f32 %v1929, %v2442
    %v2603 = vadd.f32 %v1930, %v2443
    %v2604 = vadd.f32 %v1931, %v2444
    %v2605 = vadd.f32 %v1932, %v2445
    %v2606 = vadd.f32 %v1933, %v2446
    %v2607 = vadd.f32 %v1934, %v2447
    %v2608 = vadd.f32 %v1935, %v2448
    %v2609 = vadd.f32 %v1936, %v2449
    %v2610 = vadd.f32 %v1937, %v2450
    %v2611 = vadd.f32 %v1938, %v2451
    %v2612 = vadd.f32 %v1939, %v2452
    %v2613 = vadd.f32 %v1940, %v2453
    %v2614 = vadd.f32 %v1941, %v2454
    %v2615 = vadd.f32 %v1942, %v2455
    %v2616 = vadd.f32 %v1943, %v2456
    %v2617 = vadd.f32 %v1944, %v2457
    %v2618 = vadd.f32 %v1945, %v2458
    %v2619 = vadd.f32 %v1946, %v2459
    %v2620 = vadd.f32 %v1947, %v2460
    %v2621 = vadd.f32 %v1948, %v2461
    %v2622 = vadd.f32 %v1949, %v2462
    %v2623 = vadd.f32 %v1950, %v2463
    %v2624 = vadd.f32 %v1951, %v2464
    %v2625 = vadd.f32 %v1952, %v2465
    %v2626 = vadd.f32 %v1953, %v2466
    %v2627 = vadd.f32 %v1954, %v2467
    %v2628 = vadd.f32 %v1955, %v2468
    %v2629 = vadd.f32 %v1956, %v2469
    %v2630 = vadd.f32 %v1957, %v2470
    %v2631 = vadd.f32 %v1958, %v2471
    %v2632 = vadd.f32 %v1959, %v2472
    %v2633 = vadd.f32 %v1960, %v2473
    %v2634 = vadd.f32 %v1961, %v2474
    %v2635 = vadd.f32 %v1962, %v2475
    %v2636 = vadd.f32 %v1963, %v2476
    %v2637 = vadd.f32 %v1964, %v2477
    %v2638 = vadd.f32 %v1965, %v2478
    %v2639 = vadd.f32 %v1966, %v2479
    %v2640 = vadd.f32 %v1967, %v2480
    %v2641 = vadd.f32 %v1968, %v2481
    %v2642 = vadd.f32 %v1969, %v2482
    %v2643 = vadd.f32 %v1970, %v2483
    %v2644 = vadd.f32 %v1971, %v2484
    %v2645 = vadd.f32 %v1972, %v2485
    %v2646 = vadd.f32 %v1973, %v2486
    %v2647 = vadd.f32 %v1974, %v2487
    %v2648 = vadd.f32 %v1975, %v2488
    %v2649 = vadd.f32 %v1976, %v2489
    %v2650 = vadd.f32 %v1977, %v2490
    %v2651 = vadd.f32 %v1978, %v2491
    %v2652 = vadd.f32 %v1979, %v2492
    %v2653 = vadd.f32 %v1980, %v2493
    %v2654 = vadd.f32 %v1981, %v2494
    %v2655 = vadd.f32 %v1982, %v2495
    %v2656 = vadd.f32 %v1983, %v2496
    %v2657 = vadd.f32 %v1984, %v2497
    %v2658 = vadd.f32 %v1985, %v2498
    %v2659 = vadd.f32 %v1986, %v2499
    %v2660 = vadd.f32 %v1987, %v2500
    %v2661 = vadd.f32 %v1988, %v2501
    %v2662 = vadd.f32 %v1989, %v2502
    %v2663 = vadd.f32 %v1990, %v2503
    %v2664 = vadd.f32 %v1991, %v2504
    %v2665 = vadd.f32 %v1992, %v2505
    %v2666 = vadd.f32 %v1993, %v2506
    %v2667 = vadd.f32 %v1994, %v2507
    %v2668 = vadd.f32 %v1995, %v2508
    %v2669 = vadd.f32 %v1996, %v2509
    %v2670 = vadd.f32 %v1997, %v2510
    %v2671 = vadd.f32 %v1998, %v2511
    %v2672 = vadd.f32 %v1999, %v2512
    %v2673 = vadd.f32 %v2000, %v2513
    %2674 = vst [vmem:[#allocation5] sm:$0xff] %v2514
    %2675 = vst [vmem:[#allocation5 + $0x8] sm:$0xff] %v2515
    %2676 = vst [vmem:[#allocation5 + $0x10] sm:$0xff] %v2516
    %2677 = vst [vmem:[#allocation5 + $0x18] sm:$0xff] %v2517
    %2678 = vst [vmem:[#allocation5 + $0x20] sm:$0xff] %v2518
    %2679 = vst [vmem:[#allocation5 + $0x28] sm:$0xff] %v2519
    %2680 = vst [vmem:[#allocation5 + $0x30] sm:$0xff] %v2520
    %2681 = vst [vmem:[#allocation5 + $0x38] sm:$0xff] %v2521
    %2682 = vst [vmem:[#allocation5 + $0x40] sm:$0xff] %v2522
    %2683 = vst [vmem:[#allocation5 + $0x48] sm:$0xff] %v2523
    %2684 = vst [vmem:[#allocation5 + $0x50] sm:$0xff] %v2524
    %2685 = vst [vmem:[#allocation5 + $0x58] sm:$0xff] %v2525
    %2686 = vst [vmem:[#allocation5 + $0x60] sm:$0xff] %v2526
    %2687 = vst [vmem:[#allocation5 + $0x68] sm:$0xff] %v2527
    %2688 = vst [vmem:[#allocation5 + $0x70] sm:$0xff] %v2528
    %2689 = vst [vmem:[#allocation5 + $0x78] sm:$0xff] %v2529
    %2690 = vst [vmem:[#allocation5 + $0x80] sm:$0xff] %v2530
    %2691 = vst [vmem:[#allocation5 + $0x88] sm:$0xff] %v2531
    %2692 = vst [vmem:[#allocation5 + $0x90] sm:$0xff] %v2532
    %2693 = vst [vmem:[#allocation5 + $0x98] sm:$0xff] %v2533
    %2694 = vst [vmem:[#allocation5 + $0xa0] sm:$0xff] %v2534
    %2695 = vst [vmem:[#allocation5 + $0xa8] sm:$0xff] %v2535
    %2696 = vst [vmem:[#allocation5 + $0xb0] sm:$0xff] %v2536
    %2697 = vst [vmem:[#allocation5 + $0xb8] sm:$0xff] %v2537
    %2698 = vst [vmem:[#allocation5 + $0xc0] sm:$0xff] %v2538
    %2699 = vst [vmem:[#allocation5 + $0xc8] sm:$0xff] %v2539
    %2700 = vst [vmem:[#allocation5 + $0xd0] sm:$0xff] %v2540
    %2701 = vst [vmem:[#allocation5 + $0xd8] sm:$0xff] %v2541
    %2702 = vst [vmem:[#allocation5 + $0xe0] sm:$0xff] %v2542
    %2703 = vst [vmem:[#allocation5 + $0xe8] sm:$0xff] %v2543
    %2704 = vst [vmem:[#allocation5 + $0xf0] sm:$0xff] %v2544
    %2705 = vst [vmem:[#allocation5 + $0xf8] sm:$0xff] %v2545
    %2706 = vst [vmem:[#allocation5 + $0x100] sm:$0xff] %v2546
    %2707 = vst [vmem:[#allocation5 + $0x108] sm:$0xff] %v2547
    %2708 = vst [vmem:[#allocation5 + $0x110] sm:$0xff] %v2548
    %2709 = vst [vmem:[#allocation5 + $0x118] sm:$0xff] %v2549
    %2710 = vst [vmem:[#allocation5 + $0x120] sm:$0xff] %v2550
    %2711 = vst [vmem:[#allocation5 + $0x128] sm:$0xff] %v2551
    %2712 = vst [vmem:[#allocation5 + $0x130] sm:$0xff] %v2552
    %2713 = vst [vmem:[#allocation5 + $0x138] sm:$0xff] %v2553
    %2714 = vst [vmem:[#allocation5 + $0x140] sm:$0xff] %v2554
    %2715 = vst [vmem:[#allocation5 + $0x148] sm:$0xff] %v2555
    %2716 = vst [vmem:[#allocation5 + $0x150] sm:$0xff] %v2556
    %2717 = vst [vmem:[#allocation5 + $0x158] sm:$0xff] %v2557
    %2718 = vst [vmem:[#allocation5 + $0x160] sm:$0xff] %v2558
    %2719 = vst [vmem:[#allocation5 + $0x168] sm:$0xff] %v2559
    %2720 = vst [vmem:[#allocation5 + $0x170] sm:$0xff] %v2560
    %2721 = vst [vmem:[#allocation5 + $0x178] sm:$0xff] %v2561
    %2722 = vst [vmem:[#allocation5 + $0x180] sm:$0xff] %v2562
    %2723 = vst [vmem:[#allocation5 + $0x188] sm:$0xff] %v2563
    %2724 = vst [vmem:[#allocation5 + $0x190] sm:$0xff] %v2564
    %2725 = vst [vmem:[#allocation5 + $0x198] sm:$0xff] %v2565
    %2726 = vst [vmem:[#allocation5 + $0x1a0] sm:$0xff] %v2566
    %2727 = vst [vmem:[#allocation5 + $0x1a8] sm:$0xff] %v2567
    %2728 = vst [vmem:[#allocation5 + $0x1b0] sm:$0xff] %v2568
    %2729 = vst [vmem:[#allocation5 + $0x1b8] sm:$0xff] %v2569
    %2730 = vst [vmem:[#allocation5 + $0x1c0] sm:$0xff] %v2570
    %2731 = vst [vmem:[#allocation5 + $0x1c8] sm:$0xff] %v2571
    %2732 = vst [vmem:[#allocation5 + $0x1d0] sm:$0xff] %v2572
    %2733 = vst [vmem:[#allocation5 + $0x1d8] sm:$0xff] %v2573
    %2734 = vst [vmem:[#allocation5 + $0x1e0] sm:$0xff] %v2574
    %2735 = vst [vmem:[#allocation5 + $0x1e8] sm:$0xff] %v2575
    %2736 = vst [vmem:[#allocation5 + $0x1f0] sm:$0xff] %v2576
    %2737 = vst [vmem:[#allocation5 + $0x1f8] sm:$0xff] %v2577
    %2738 = vst [vmem:[#allocation5 + $0x200] sm:$0xff] %v2578
    %2739 = vst [vmem:[#allocation5 + $0x208] sm:$0xff] %v2579
    %2740 = vst [vmem:[#allocation5 + $0x210] sm:$0xff] %v2580
    %2741 = vst [vmem:[#allocation5 + $0x218] sm:$0xff] %v2581
    %2742 = vst [vmem:[#allocation5 + $0x220] sm:$0xff] %v2582
    %2743 = vst [vmem:[#allocation5 + $0x228] sm:$0xff] %v2583
    %2744 = vst [vmem:[#allocation5 + $0x230] sm:$0xff] %v2584
    %2745 = vst [vmem:[#allocation5 + $0x238] sm:$0xff] %v2585
    %2746 = vst [vmem:[#allocation5 + $0x240] sm:$0xff] %v2586
    %2747 = vst [vmem:[#allocation5 + $0x248] sm:$0xff] %v2587
    %2748 = vst [vmem:[#allocation5 + $0x250] sm:$0xff] %v2588
    %2749 = vst [vmem:[#allocation5 + $0x258] sm:$0xff] %v2589
    %2750 = vst [vmem:[#allocation5 + $0x260] sm:$0xff] %v2590
    %2751 = vst [vmem:[#allocation5 + $0x268] sm:$0xff] %v2591
    %2752 = vst [vmem:[#allocation5 + $0x270] sm:$0xff] %v2592
    %2753 = vst [vmem:[#allocation5 + $0x278] sm:$0xff] %v2593
    %2754 = vst [vmem:[#allocation5 + $0x280] sm:$0xff] %v2594
    %2755 = vst [vmem:[#allocation5 + $0x288] sm:$0xff] %v2595
    %2756 = vst [vmem:[#allocation5 + $0x290] sm:$0xff] %v2596
    %2757 = vst [vmem:[#allocation5 + $0x298] sm:$0xff] %v2597
    %2758 = vst [vmem:[#allocation5 + $0x2a0] sm:$0xff] %v2598
    %2759 = vst [vmem:[#allocation5 + $0x2a8] sm:$0xff] %v2599
    %2760 = vst [vmem:[#allocation5 + $0x2b0] sm:$0xff] %v2600
    %2761 = vst [vmem:[#allocation5 + $0x2b8] sm:$0xff] %v2601
    %2762 = vst [vmem:[#allocation5 + $0x2c0] sm:$0xff] %v2602
    %2763 = vst [vmem:[#allocation5 + $0x2c8] sm:$0xff] %v2603
    %2764 = vst [vmem:[#allocation5 + $0x2d0] sm:$0xff] %v2604
    %2765 = vst [vmem:[#allocation5 + $0x2d8] sm:$0xff] %v2605
    %2766 = vst [vmem:[#allocation5 + $0x2e0] sm:$0xff] %v2606
    %2767 = vst [vmem:[#allocation5 + $0x2e8] sm:$0xff] %v2607
    %2768 = vst [vmem:[#allocation5 + $0x2f0] sm:$0xff] %v2608
    %2769 = vst [vmem:[#allocation5 + $0x2f8] sm:$0xff] %v2609
    %2770 = vst [vmem:[#allocation5 + $0x300] sm:$0xff] %v2610
    %2771 = vst [vmem:[#allocation5 + $0x308] sm:$0xff] %v2611
    %2772 = vst [vmem:[#allocation5 + $0x310] sm:$0xff] %v2612
    %2773 = vst [vmem:[#allocation5 + $0x318] sm:$0xff] %v2613
    %2774 = vst [vmem:[#allocation5 + $0x320] sm:$0xff] %v2614
    %2775 = vst [vmem:[#allocation5 + $0x328] sm:$0xff] %v2615
    %2776 = vst [vmem:[#allocation5 + $0x330] sm:$0xff] %v2616
    %2777 = vst [vmem:[#allocation5 + $0x338] sm:$0xff] %v2617
    %2778 = vst [vmem:[#allocation5 + $0x340] sm:$0xff] %v2618
    %2779 = vst [vmem:[#allocation5 + $0x348] sm:$0xff] %v2619
    %2780 = vst [vmem:[#allocation5 + $0x350] sm:$0xff] %v2620
    %2781 = vst [vmem:[#allocation5 + $0x358] sm:$0xff] %v2621
    %2782 = vst [vmem:[#allocation5 + $0x360] sm:$0xff] %v2622
    %2783 = vst [vmem:[#allocation5 + $0x368] sm:$0xff] %v2623
    %2784 = vst [vmem:[#allocation5 + $0x370] sm:$0xff] %v2624
    %2785 = vst [vmem:[#allocation5 + $0x378] sm:$0xff] %v2625
    %2786 = vst [vmem:[#allocation5 + $0x380] sm:$0xff] %v2626
    %2787 = vst [vmem:[#allocation5 + $0x388] sm:$0xff] %v2627
    %2788 = vst [vmem:[#allocation5 + $0x390] sm:$0xff] %v2628
    %2789 = vst [vmem:[#allocation5 + $0x398] sm:$0xff] %v2629
    %2790 = vst [vmem:[#allocation5 + $0x3a0] sm:$0xff] %v2630
    %2791 = vst [vmem:[#allocation5 + $0x3a8] sm:$0xff] %v2631
    %2792 = vst [vmem:[#allocation5 + $0x3b0] sm:$0xff] %v2632
    %2793 = vst [vmem:[#allocation5 + $0x3b8] sm:$0xff] %v2633
    %2794 = vst [vmem:[#allocation5 + $0x3c0] sm:$0xff] %v2634
    %2795 = vst [vmem:[#allocation5 + $0x3c8] sm:$0xff] %v2635
    %2796 = vst [vmem:[#allocation5 + $0x3d0] sm:$0xff] %v2636
    %2797 = vst [vmem:[#allocation5 + $0x3d8] sm:$0xff] %v2637
    %2798 = vst [vmem:[#allocation5 + $0x3e0] sm:$0xff] %v2638
    %2799 = vst [vmem:[#allocation5 + $0x3e8] sm:$0xff] %v2639
    %2800 = vst [vmem:[#allocation5 + $0x3f0] sm:$0xff] %v2640
    %2801 = vst [vmem:[#allocation5 + $0x3f8] sm:$0xff] %v2641
    %2802 = vst [vmem:[#allocation5 + $0x400] sm:$0xff] %v2642
    %2803 = vst [vmem:[#allocation5 + $0x408] sm:$0xff] %v2643
    %2804 = vst [vmem:[#allocation5 + $0x410] sm:$0xff] %v2644
    %2805 = vst [vmem:[#allocation5 + $0x418] sm:$0xff] %v2645
    %2806 = vst [vmem:[#allocation5 + $0x420] sm:$0xff] %v2646
    %2807 = vst [vmem:[#allocation5 + $0x428] sm:$0xff] %v2647
    %2808 = vst [vmem:[#allocation5 + $0x430] sm:$0xff] %v2648
    %2809 = vst [vmem:[#allocation5 + $0x438] sm:$0xff] %v2649
    %2810 = vst [vmem:[#allocation5 + $0x440] sm:$0xff] %v2650
    %2811 = vst [vmem:[#allocation5 + $0x448] sm:$0xff] %v2651
    %2812 = vst [vmem:[#allocation5 + $0x450] sm:$0xff] %v2652
    %2813 = vst [vmem:[#allocation5 + $0x458] sm:$0xff] %v2653
    %2814 = vst [vmem:[#allocation5 + $0x460] sm:$0xff] %v2654
    %2815 = vst [vmem:[#allocation5 + $0x468] sm:$0xff] %v2655
    %2816 = vst [vmem:[#allocation5 + $0x470] sm:$0xff] %v2656
    %2817 = vst [vmem:[#allocation5 + $0x478] sm:$0xff] %v2657
    %2818 = vst [vmem:[#allocation5 + $0x480] sm:$0xff] %v2658
    %2819 = vst [vmem:[#allocation5 + $0x488] sm:$0xff] %v2659
    %2820 = vst [vmem:[#allocation5 + $0x490] sm:$0xff] %v2660
    %2821 = vst [vmem:[#allocation5 + $0x498] sm:$0xff] %v2661
    %2822 = vst [vmem:[#allocation5 + $0x4a0] sm:$0xff] %v2662
    %2823 = vst [vmem:[#allocation5 + $0x4a8] sm:$0xff] %v2663
    %2824 = vst [vmem:[#allocation5 + $0x4b0] sm:$0xff] %v2664
    %2825 = vst [vmem:[#allocation5 + $0x4b8] sm:$0xff] %v2665
    %2826 = vst [vmem:[#allocation5 + $0x4c0] sm:$0xff] %v2666
    %2827 = vst [vmem:[#allocation5 + $0x4c8] sm:$0xff] %v2667
    %2828 = vst [vmem:[#allocation5 + $0x4d0] sm:$0xff] %v2668
    %2829 = vst [vmem:[#allocation5 + $0x4d8] sm:$0xff] %v2669
    %2830 = vst [vmem:[#allocation5 + $0x4e0] sm:$0xff] %v2670
    %2831 = vst [vmem:[#allocation5 + $0x4e8] sm:$0xff] %v2671
    %2832 = vst [vmem:[#allocation5 + $0x4f0] sm:$0xff] %v2672
    %2833 = vst [vmem:[#allocation5 + $0x4f8] sm:$0xff] %v2673
    // Predicated region
    $region10: #{tpu_custom_call.1} parent=1 // pred_check
      _
    $region11: #{tpu_custom_call.1} parent=1 // pred_check_branch
      %2835 = sbr.rel (0) target = $region13
    $region12: #{tpu_custom_call.1} parent=1 // pred_region
      %2837 = vsyncadd [#allocation4], 0
      %s2838 = sshll.u32 [#allocation5], 4
      %s2839 = int_to_ptr.vmem [resolvable:$true] %s2838
      %s2840 = sshll.u32 %s1, 4
      %s2841 = int_to_ptr.hbm [resolvable:$true] %s2840
      %2846 = dma.vmem_to_hbm [thread:$0]  %s2839, 20480, %s2841, [#allocation4], 128, 128, 8
    $region13: #{tpu_custom_call.1} parent=1 // pred_fallthru
      _
    // Predicated region
    $region14: #{tpu_custom_call.1} parent=1 // pred_check
      _
    $region15: #{tpu_custom_call.1} parent=1 // pred_check_branch
      %2848 = sbr.rel (0) target = $region17
    $region16: #{tpu_custom_call.1} parent=1 // pred_region
      %2850 = dma.done [#allocation4], 20480
    $region17: #{tpu_custom_call.1} parent=1 // pred_fallthru
      _
    %2851 = vsyncpa [#allocation3], 1
    %2852 = vsyncpa [#allocation4], 1

</llo_original>
